<compile_context>
chip_gen: v6e
topology: v6e:2x2x1
jax: 0.10.0
libtpu: 0.0.40
codegen_flags: <defaults>
</compile_context>

<pallas_src>
import functools

import jax
import jax.numpy as jnp
from jax import lax
from jax.experimental import pallas as pl
from jax.experimental.pallas import tpu as pltpu

BN_EPS = 1e-5


def _round_up(x, m):
    return (x + m - 1) // m * m


# ------------------------------ Pallas kernel --------------------------------

def _down_block_kernel(xp_ref, w11_ref, b11_ref, w21_ref, b21_ref,
                       w22_ref, b22_ref, wf1_ref, wf2_ref, bf_ref,
                       o_ref, t2_ref, *, cin, ch, cout, ho, wo):
    """Fused DownBlock for a block of Nb images.

    xp_ref : (Nb, 4, Hp_pad, Wp*Cin)  zero-padded stride-2 phases of x, with the
             (w, c) pair packed on the lane axis; phase p = 2*ph + pw and
             xp[n, p, a, b*Cin + c] == x[n, 2(a-1)+ph, 2(b-1)+pw, c] (0 outside).
    w11_ref: (5, 5, Wo*Cin)  depthwise conv11 weights, BN11 folded, W-tiled.
    b11_ref: (1, Wo*Cin)     folded BN11 bias, W-tiled.
    w21_ref: (Wp*Cin, Wp*ch) conv21 block-diag over W, BN21 folded, bf16.
    b21_ref: (1, Wp*ch)      folded BN21 bias, W-tiled.
    w22_ref: (5, 5, Wo*ch)   depthwise conv22 weights, BN22 folded, W-tiled.
    b22_ref: (1, Wo*ch)      folded BN22 bias, W-tiled.
    wf1_ref: (Wo*Cin, Wo*Cout) conv12 block-diag, BN12 folded, cols -> EVEN outs, bf16.
    wf2_ref: (Wo*ch,  Wo*Cout) conv23 block-diag, BN23 folded, cols -> ODD outs, bf16.
    bf_ref : (1, Wo*Cout)    interleaved folded BN12/BN23 bias, W-tiled.
    o_ref  : (Nb, Ho, Wo*Cout) already channel-shuffled, lane-dense output.
    t2_ref : VMEM scratch (Nb, 4, Hp_pad, Wp*ch) branch-2 activation, 1-px-padded.
    """
    nb, _, hp_pad, _ = xp_ref.shape
    wp = wo + 2

    # ---- branch 2 / conv21: 1x1 conv + BN + ReLU over the whole padded slab
    # (one MXU matmul; block-diagonal weight keeps the packed (w, c) lane layout).
    a = xp_ref[...].reshape(nb * 4 * hp_pad, wp * cin).astype(jnp.bfloat16)
    t2 = jnp.dot(a, w21_ref[...], preferred_element_type=jnp.float32)
    t2 = jnp.maximum(t2 + b21_ref[...], 0.0).reshape(nb, 4, hp_pad, wp * ch)
    # Zero the 1-phase-pixel border so it acts as conv22's padding=2 (no
    # full-buffer zero-fill, no misaligned interior scatter).
    hidx = lax.broadcasted_iota(jnp.int32, t2.shape, 2)
    lidx = lax.broadcasted_iota(jnp.int32, t2.shape, 3)
    keep = (hidx >= 1) & (hidx <= ho) & (lidx >= ch) & (lidx < (wp - 1) * ch)
    t2_ref[...] = jnp.where(keep, t2, 0.0)

    # ---- depthwise 5x5 stride-2 convs + folded BN bias (taps fully unrolled).
    # f32 on the VPU; per-tap weights pre-tiled along the packed lane axis and
    # the weight loads hoisted out of the 25-tap loop.
    w11 = w11_ref[...]
    w22 = w22_ref[...]
    acc1 = jnp.zeros((nb, ho, wo * cin), jnp.float32)
    acc2 = jnp.zeros((nb, ho, wo * ch), jnp.float32)
    for kh in range(5):
        ph, ah = kh % 2, kh // 2                      # kh = 2*ah + ph
        for kw in range(5):
            pw, bw = kw % 2, kw // 2                  # kw = 2*bw + pw
            p = 2 * ph + pw
            acc1 = acc1 + (xp_ref[:, p, ah:ah + ho, bw * cin:(bw + wo) * cin]
                           * w11[kh, kw:kw + 1, :])
            acc2 = acc2 + (t2_ref[:, p, ah:ah + ho, bw * ch:(bw + wo) * ch]
                           * w22[kh, kw:kw + 1, :])
    d1 = (acc1 + b11_ref[...]).reshape(nb * ho, wo * cin).astype(jnp.bfloat16)
    d2 = (acc2 + b22_ref[...]).reshape(nb * ho, wo * ch).astype(jnp.bfloat16)

    # ---- final 1x1 convs + BN + ReLU.  channel_shuffle(groups=2) is folded into
    # the (block-diagonal, column-permuted) weights, so the matmul result is
    # already in the shuffled, lane-dense (Ho, Wo*Cout) layout: one full store.
    y = jnp.dot(d1, wf1_ref[...], preferred_element_type=jnp.float32)
    y = y + jnp.dot(d2, wf2_ref[...], preferred_element_type=jnp.float32)
    y = jnp.maximum(y + bf_ref[...], 0.0)
    o_ref[...] = y.reshape(nb, ho, wo * cout).astype(o_ref.dtype)


# -------------------------------- wrapper -------------------------------------

def _fold_bn(bn):
    gamma, beta, mean, var = bn
    scale = gamma / jnp.sqrt(var + BN_EPS)
    return scale, beta - mean * scale


def down_block(x_nchw, params, shuffle_groups=2, batch_block=8):
    """DownBlock forward: (N, Cin, H, W) -> (N, Cout, H//2, W//2)."""
    assert shuffle_groups == 2
    N, Cin, H, W = x_nchw.shape
    assert H % 2 == 0 and W % 2 == 0
    Ho, Wo = H // 2, W // 2
    ch = params["w12"].shape[1]
    Cout = 2 * ch
    Hp = Ho + 2                      # phase rows incl. the 1-px conv border
    Hp_pad = _round_up(Hp, 8)        # keep in-kernel sublane merges metadata-only
    Wp = Wo + 2
    f32, bf16 = jnp.float32, jnp.bfloat16

    # images per grid step (amortize ~0.35us/step, fill MXU rows)
    Nb = min(N, batch_block)
    while N % Nb:
        Nb -= 1

    # ---- fold inference-mode BatchNorm into weights / biases (trace time, free)
    s11, b11 = _fold_bn(params["bn11"])
    s12, b12 = _fold_bn(params["bn12"])
    s21, b21 = _fold_bn(params["bn21"])
    s22, b22 = _fold_bn(params["bn22"])
    s23, b23 = _fold_bn(params["bn23"])

    # depthwise weights / biases, tiled along the packed (w, c) lane axis (f32: VPU path)
    w11t = jnp.tile(params["w11"] * s11[None, None, :], (1, 1, Wo)).astype(f32)
    w22t = jnp.tile(params["w22"] * s22[None, None, :], (1, 1, Wo)).astype(f32)
    b11t = jnp.tile(b11, Wo).reshape(1, Wo * Cin).astype(f32)
    b22t = jnp.tile(b22, Wo).reshape(1, Wo * ch).astype(f32)

    # conv21: block-diagonal over the (padded) W positions -> one bf16 MXU matmul
    w21b = jnp.kron(jnp.eye(Wp, dtype=f32),
                    params["w21"] * s21[None, :]).astype(bf16)
    b21t = jnp.tile(b21, Wp).reshape(1, Wp * ch).astype(f32)

    # conv12 / conv23: BN folded, channel_shuffle(groups=2) folded into the column
    # permutation (even cols <- branch1, odd cols <- branch2), then block-diagonal
    # over W so the result lands directly in the lane-dense (w, cout) layout.
    wf1 = jnp.zeros((Cin, Cout), f32).at[:, 0::2].set(params["w12"] * s12[None, :])
    wf2 = jnp.zeros((ch, Cout), f32).at[:, 1::2].set(params["w23"] * s23[None, :])
    wf1b = jnp.kron(jnp.eye(Wo, dtype=f32), wf1).astype(bf16)
    wf2b = jnp.kron(jnp.eye(Wo, dtype=f32), wf2).astype(bf16)
    bf = jnp.zeros((Cout,), f32).at[0::2].set(b12).at[1::2].set(b23)
    bft = jnp.tile(bf, Wo).reshape(1, Wo * Cout).astype(f32)

    # ---- input prep (fused in XLA): NCHW -> NHWC, zero-pad (padding=2 plus
    # sublane-alignment rows), split the stride-2 phases, pack (w, c) on the
    # minor axis.  Replaces the old in-kernel pad scratch + zero-fill + scatter.
    x = jnp.transpose(x_nchw, (0, 2, 3, 1))
    x = jnp.pad(x, ((0, 0), (2, 2 + 2 * (Hp_pad - Hp)), (2, 2), (0, 0)))
    x = x.reshape(N, Hp_pad, 2, Wp, 2, Cin).transpose(0, 2, 4, 1, 3, 5)
    xp = x.reshape(N, 4, Hp_pad, Wp * Cin)

    kernel = functools.partial(_down_block_kernel, cin=Cin, ch=ch, cout=Cout,
                               ho=Ho, wo=Wo)
    y = pl.pallas_call(
        kernel,
        out_shape=jax.ShapeDtypeStruct((N, Ho, Wo * Cout), x_nchw.dtype),
        grid=(N // Nb,),
        in_specs=[
            pl.BlockSpec((Nb, 4, Hp_pad, Wp * Cin), lambda n: (n, 0, 0, 0)),
            pl.BlockSpec((5, 5, Wo * Cin), lambda n: (0, 0, 0)),
            pl.BlockSpec((1, Wo * Cin), lambda n: (0, 0)),
            pl.BlockSpec((Wp * Cin, Wp * ch), lambda n: (0, 0)),
            pl.BlockSpec((1, Wp * ch), lambda n: (0, 0)),
            pl.BlockSpec((5, 5, Wo * ch), lambda n: (0, 0, 0)),
            pl.BlockSpec((1, Wo * ch), lambda n: (0, 0)),
            pl.BlockSpec((Wo * Cin, Wo * Cout), lambda n: (0, 0)),
            pl.BlockSpec((Wo * ch, Wo * Cout), lambda n: (0, 0)),
            pl.BlockSpec((1, Wo * Cout), lambda n: (0, 0)),
        ],
        out_specs=pl.BlockSpec((Nb, Ho, Wo * Cout), lambda n: (n, 0, 0)),
        scratch_shapes=[
            pltpu.VMEM((Nb, 4, Hp_pad, Wp * ch), jnp.float32),
        ],
        compiler_params=pltpu.CompilerParams(
            dimension_semantics=("parallel",)),
    )(xp, w11t, b11t, w21b, b21t, w22t, b22t, wf1b, wf2b, bft)

    # (N, Ho, Wo*Cout) is row-major identical to (N, Ho, Wo, Cout)
    y = y.reshape(N, Ho, Wo, Cout)
    return jnp.transpose(y, (0, 3, 1, 2))  # NHWC -> NCHW


# --------------------------- pure-JAX reference --------------------------------

def _reference_down_block(x_nchw, params):
    """Un-fused reference mirroring the PyTorch module (inference BN)."""
    hi = jax.lax.Precision.HIGHEST

    def bn(x, p):
        gamma, beta, mean, var = p
        inv = gamma / jnp.sqrt(var + BN_EPS)
        return x * inv[None, :, None, None] + (beta - mean * inv)[None, :, None, None]

    def dw5x5_s2(x, w):                       # w: (5,5,C)
        C = x.shape[1]
        wt = jnp.transpose(w, (2, 0, 1))[:, None, :, :]        # (C,1,5,5)
        return jax.lax.conv_general_dilated(
            x, wt, window_strides=(2, 2), padding=((2, 2), (2, 2)),
            dimension_numbers=("NCHW", "OIHW", "NCHW"),
            feature_group_count=C, precision=hi)

    def pw(x, w):                              # w: (Cin, Cout)
        wt = jnp.transpose(w, (1, 0))[:, :, None, None]        # (Cout,Cin,1,1)
        return jax.lax.conv_general_dilated(
            x, wt, window_strides=(1, 1), padding="VALID",
            dimension_numbers=("NCHW", "OIHW", "NCHW"), precision=hi)

    x1 = bn(dw5x5_s2(x_nchw, params["w11"]), params["bn11"])
    x1 = jax.nn.relu(bn(pw(x1, params["w12"]), params["bn12"]))
    x2 = jax.nn.relu(bn(pw(x_nchw, params["w21"]), params["bn21"]))
    x2 = bn(dw5x5_s2(x2, params["w22"]), params["bn22"])
    x2 = jax.nn.relu(bn(pw(x2, params["w23"]), params["bn23"]))
    y = jnp.concatenate([x1, x2], axis=1)
    n, c, h, w = y.shape
    return y.reshape(n, 2, c // 2, h, w).transpose(0, 2, 1, 3, 4).reshape(n, c, h, w)


# --------------------------- parameter init ------------------------------------

def init_params(key, in_channels, out_channels):
    ch = out_channels // 2

    def bn_params(k, c):
        k1, k2, k3, k4 = jax.random.split(k, 4)
        gamma = 1.0 + 0.1 * jax.random.normal(k1, (c,), jnp.float32)
        beta = 0.1 * jax.random.normal(k2, (c,), jnp.float32)
        mean = 0.1 * jax.random.normal(k3, (c,), jnp.float32)
        var = 0.5 + jax.random.uniform(k4, (c,), jnp.float32)
        return gamma, beta, mean, var

    ks = jax.random.split(key, 10)
    return {
        "w11": 0.1 * jax.random.normal(ks[0], (5, 5, in_channels), jnp.float32),
        "bn11": bn_params(ks[1], in_channels),
        "w12": 0.1 * jax.random.normal(ks[2], (in_channels, ch), jnp.float32),
        "bn12": bn_params(ks[3], ch),
        "w21": 0.1 * jax.random.normal(ks[4], (in_channels, ch), jnp.float32),
        "bn21": bn_params(ks[5], ch),
        "w22": 0.1 * jax.random.normal(ks[6], (5, 5, ch), jnp.float32),
        "bn22": bn_params(ks[7], ch),
        "w23": 0.1 * jax.random.normal(ks[8], (ch, ch), jnp.float32),
        "bn23": bn_params(ks[9], ch),
    }


if __name__ == "__main__":
    in_channels, out_channels = 8, 16
    N, H, W = 2, 16, 16

    key = jax.random.PRNGKey(0)
    kp, kx = jax.random.split(key)
    params = init_params(kp, in_channels, out_channels)
    x = jax.random.normal(kx, (N, in_channels, H, W), jnp.float32)  # NCHW like PyTorch

    fn = jax.jit(functools.partial(down_block, params=params))
    y = jax.block_until_ready(fn(x))

    assert y.shape == (N, out_channels, H // 2, W // 2), y.shape
    assert bool(jnp.all(jnp.isfinite(y)))

    y_ref = _reference_down_block(x, params)
    err = float(jnp.max(jnp.abs(y - y_ref)))
    # bf16 MXU operands for the 1x1 convs -> relaxed tolerance (depthwise stays f32)
    assert bool(jnp.allclose(y, y_ref, atol=3e-2, rtol=3e-2)), err

    print("KERNEL_OK")
</pallas_src>

<mosaic_0001>
module attributes {stable_mosaic.version = 11 : i64} {
  func.func @_down_block_kernel(%arg0: i32, %arg1: memref<2x4x16x80xf32, #tpu.memory_space<vmem>>, %arg2: memref<5x5x64xf32, #tpu.memory_space<vmem>>, %arg3: memref<1x64xf32, #tpu.memory_space<vmem>>, %arg4: memref<80x80xbf16, #tpu.memory_space<vmem>>, %arg5: memref<1x80xf32, #tpu.memory_space<vmem>>, %arg6: memref<5x5x64xf32, #tpu.memory_space<vmem>>, %arg7: memref<1x64xf32, #tpu.memory_space<vmem>>, %arg8: memref<64x128xbf16, #tpu.memory_space<vmem>>, %arg9: memref<64x128xbf16, #tpu.memory_space<vmem>>, %arg10: memref<1x128xf32, #tpu.memory_space<vmem>>, %arg11: memref<2x8x128xf32, #tpu.memory_space<vmem>>, %arg12: memref<2x4x16x80xf32, #tpu.memory_space<vmem>>) attributes {dimension_semantics = [#tpu.dimension_semantics<parallel>], iteration_bounds = array<i64: 1>, scalar_prefetch = 0 : i64, scratch_operands = 1 : i64, tpu.core_type = #tpu.core_type<tc>, window_params = [{transform_indices = @transform_0, window_bounds = array<i64: 2, 4, 16, 80>}, {pipeline_mode = #tpu.pipeline_mode<synchronous>, transform_indices = @transform_1, window_bounds = array<i64: 5, 5, 64>}, {pipeline_mode = #tpu.pipeline_mode<synchronous>, transform_indices = @transform_2, window_bounds = array<i64: 1, 64>}, {pipeline_mode = #tpu.pipeline_mode<synchronous>, transform_indices = @transform_3, window_bounds = array<i64: 80, 80>}, {pipeline_mode = #tpu.pipeline_mode<synchronous>, transform_indices = @transform_4, window_bounds = array<i64: 1, 80>}, {pipeline_mode = #tpu.pipeline_mode<synchronous>, transform_indices = @transform_5, window_bounds = array<i64: 5, 5, 64>}, {pipeline_mode = #tpu.pipeline_mode<synchronous>, transform_indices = @transform_6, window_bounds = array<i64: 1, 64>}, {pipeline_mode = #tpu.pipeline_mode<synchronous>, transform_indices = @transform_7, window_bounds = array<i64: 64, 128>}, {pipeline_mode = #tpu.pipeline_mode<synchronous>, transform_indices = @transform_8, window_bounds = array<i64: 64, 128>}, {pipeline_mode = #tpu.pipeline_mode<synchronous>, transform_indices = @transform_9, window_bounds = array<i64: 1, 128>}, {transform_indices = @transform_10, window_bounds = array<i64: 2, 8, 128>}]} {
    %c0 = arith.constant 0 : index
    %c0_0 = arith.constant 0 : index
    %c0_1 = arith.constant 0 : index
    %c0_2 = arith.constant 0 : index
    %0 = vector.load %arg1[%c0, %c0_0, %c0_1, %c0_2] : memref<2x4x16x80xf32, #tpu.memory_space<vmem>>, vector<2x4x16x80xf32>
    %1 = vector.shape_cast %0 : vector<2x4x16x80xf32> to vector<128x80xf32>
    %2 = arith.truncf %1 : vector<128x80xf32> to vector<128x80xbf16>
    %c0_3 = arith.constant 0 : index
    %c0_4 = arith.constant 0 : index
    %3 = vector.load %arg4[%c0_3, %c0_4] : memref<80x80xbf16, #tpu.memory_space<vmem>>, vector<80x80xbf16>
    %cst = arith.constant dense<0.000000e+00> : vector<128x80xf32>
    %4 = tpu.matmul %2, %3, %cst {dimension_numbers = #tpu.dot_dimension_numbers<[1], [0], [0], [1], [0, 0, 1, 1], [], []>} : vector<128x80xbf16>, vector<80x80xbf16>, vector<128x80xf32> -> vector<128x80xf32>
    %c0_5 = arith.constant 0 : index
    %c0_6 = arith.constant 0 : index
    %5 = vector.load %arg5[%c0_5, %c0_6] : memref<1x80xf32, #tpu.memory_space<vmem>>, vector<1x80xf32>
    %6 = vector.broadcast %5 : vector<1x80xf32> to vector<128x80xf32>
    %7 = arith.addf %4, %6 : vector<128x80xf32>
    %cst_7 = arith.constant 0.000000e+00 : f32
    %8 = vector.broadcast %cst_7 : f32 to vector<128x80xf32>
    %9 = arith.maximumf %7, %8 : vector<128x80xf32>
    %10 = vector.shape_cast %9 : vector<128x80xf32> to vector<2x4x16x80xf32>
    %11 = tpu.iota {dimensions = array<i32: 2>} : vector<2x4x16x80xi32>
    %12 = tpu.iota {dimensions = array<i32: 3>} : vector<2x4x16x80xi32>
    %c1_i32 = arith.constant 1 : i32
    %13 = vector.broadcast %c1_i32 : i32 to vector<2x4x16x80xi32>
    %14 = arith.cmpi sge, %11, %13 : vector<2x4x16x80xi32>
    %c8_i32 = arith.constant 8 : i32
    %15 = vector.broadcast %c8_i32 : i32 to vector<2x4x16x80xi32>
    %16 = arith.cmpi sle, %11, %15 : vector<2x4x16x80xi32>
    %17 = arith.andi %14, %16 : vector<2x4x16x80xi1>
    %c8_i32_8 = arith.constant 8 : i32
    %18 = vector.broadcast %c8_i32_8 : i32 to vector<2x4x16x80xi32>
    %19 = arith.cmpi sge, %12, %18 : vector<2x4x16x80xi32>
    %20 = arith.andi %17, %19 : vector<2x4x16x80xi1>
    %c72_i32 = arith.constant 72 : i32
    %21 = vector.broadcast %c72_i32 : i32 to vector<2x4x16x80xi32>
    %22 = arith.cmpi slt, %12, %21 : vector<2x4x16x80xi32>
    %23 = arith.andi %20, %22 : vector<2x4x16x80xi1>
    %cst_9 = arith.constant 0.000000e+00 : f32
    %24 = vector.broadcast %cst_9 : f32 to vector<2x4x16x80xf32>
    %25 = arith.select %23, %10, %24 : vector<2x4x16x80xi1>, vector<2x4x16x80xf32>
    %c0_10 = arith.constant 0 : index
    %c0_11 = arith.constant 0 : index
    %c0_12 = arith.constant 0 : index
    %c0_13 = arith.constant 0 : index
    %26 = vector.load %arg12[%c0_10, %c0_11, %c0_12, %c0_13] : memref<2x4x16x80xf32, #tpu.memory_space<vmem>>, vector<2x4x16x80xf32>
    tpu.vector_store %arg12[%c0_10, %c0_11, %c0_12, %c0_13], %25 {strides = array<i32>} : memref<2x4x16x80xf32, #tpu.memory_space<vmem>>, vector<2x4x16x80xf32>,
    %c0_14 = arith.constant 0 : index
    %c0_15 = arith.constant 0 : index
    %c0_16 = arith.constant 0 : index
    %27 = vector.load %arg2[%c0_14, %c0_15, %c0_16] : memref<5x5x64xf32, #tpu.memory_space<vmem>>, vector<5x5x64xf32>
    %c0_17 = arith.constant 0 : index
    %c0_18 = arith.constant 0 : index
    %c0_19 = arith.constant 0 : index
    %28 = vector.load %arg6[%c0_17, %c0_18, %c0_19] : memref<5x5x64xf32, #tpu.memory_space<vmem>>, vector<5x5x64xf32>
    %cst_20 = arith.constant 0.000000e+00 : f32
    %29 = vector.broadcast %cst_20 : f32 to vector<2x8x64xf32>
    %cst_21 = arith.constant 0.000000e+00 : f32
    %30 = vector.broadcast %cst_21 : f32 to vector<2x8x64xf32>
    %c0_22 = arith.constant 0 : index
    %c0_23 = arith.constant 0 : index
    %c0_24 = arith.constant 0 : index
    %c0_25 = arith.constant 0 : index
    %31 = vector.load %arg1[%c0_22, %c0_23, %c0_24, %c0_25] : memref<2x4x16x80xf32, #tpu.memory_space<vmem>>, vector<2x1x8x64xf32>
    %32 = vector.shape_cast %31 : vector<2x1x8x64xf32> to vector<2x8x64xf32>
    %33 = vector.extract_strided_slice %27 {offsets = [0, 0, 0], sizes = [1, 1, 64], strides = [1, 1, 1]} : vector<5x5x64xf32> to vector<1x1x64xf32>
    %34 = vector.shape_cast %33 : vector<1x1x64xf32> to vector<1x64xf32>
    %35 = vector.shape_cast %34 : vector<1x64xf32> to vector<1x1x64xf32>
    %36 = vector.broadcast %35 : vector<1x1x64xf32> to vector<2x8x64xf32>
    %37 = arith.mulf %32, %36 : vector<2x8x64xf32>
    %38 = arith.addf %29, %37 : vector<2x8x64xf32>
    %c0_26 = arith.constant 0 : index
    %c0_27 = arith.constant 0 : index
    %c0_28 = arith.constant 0 : index
    %c0_29 = arith.constant 0 : index
    %39 = vector.load %arg12[%c0_26, %c0_27, %c0_28, %c0_29] : memref<2x4x16x80xf32, #tpu.memory_space<vmem>>, vector<2x1x8x64xf32>
    %40 = vector.shape_cast %39 : vector<2x1x8x64xf32> to vector<2x8x64xf32>
    %41 = vector.extract_strided_slice %28 {offsets = [0, 0, 0], sizes = [1, 1, 64], strides = [1, 1, 1]} : vector<5x5x64xf32> to vector<1x1x64xf32>
    %42 = vector.shape_cast %41 : vector<1x1x64xf32> to vector<1x64xf32>
    %43 = vector.shape_cast %42 : vector<1x64xf32> to vector<1x1x64xf32>
    %44 = vector.broadcast %43 : vector<1x1x64xf32> to vector<2x8x64xf32>
    %45 = arith.mulf %40, %44 : vector<2x8x64xf32>
    %46 = arith.addf %30, %45 : vector<2x8x64xf32>
    %c0_30 = arith.constant 0 : index
    %c1 = arith.constant 1 : index
    %c0_31 = arith.constant 0 : index
    %c0_32 = arith.constant 0 : index
    %47 = vector.load %arg1[%c0_30, %c1, %c0_31, %c0_32] : memref<2x4x16x80xf32, #tpu.memory_space<vmem>>, vector<2x1x8x64xf32>
    %48 = vector.shape_cast %47 : vector<2x1x8x64xf32> to vector<2x8x64xf32>
    %49 = vector.extract_strided_slice %27 {offsets = [0, 1, 0], sizes = [1, 1, 64], strides = [1, 1, 1]} : vector<5x5x64xf32> to vector<1x1x64xf32>
    %50 = vector.shape_cast %49 : vector<1x1x64xf32> to vector<1x64xf32>
    %51 = vector.shape_cast %50 : vector<1x64xf32> to vector<1x1x64xf32>
    %52 = vector.broadcast %51 : vector<1x1x64xf32> to vector<2x8x64xf32>
    %53 = arith.mulf %48, %52 : vector<2x8x64xf32>
    %54 = arith.addf %38, %53 : vector<2x8x64xf32>
    %c0_33 = arith.constant 0 : index
    %c1_34 = arith.constant 1 : index
    %c0_35 = arith.constant 0 : index
    %c0_36 = arith.constant 0 : index
    %55 = vector.load %arg12[%c0_33, %c1_34, %c0_35, %c0_36] : memref<2x4x16x80xf32, #tpu.memory_space<vmem>>, vector<2x1x8x64xf32>
    %56 = vector.shape_cast %55 : vector<2x1x8x64xf32> to vector<2x8x64xf32>
    %57 = vector.extract_strided_slice %28 {offsets = [0, 1, 0], sizes = [1, 1, 64], strides = [1, 1, 1]} : vector<5x5x64xf32> to vector<1x1x64xf32>
    %58 = vector.shape_cast %57 : vector<1x1x64xf32> to vector<1x64xf32>
    %59 = vector.shape_cast %58 : vector<1x64xf32> to vector<1x1x64xf32>
    %60 = vector.broadcast %59 : vector<1x1x64xf32> to vector<2x8x64xf32>
    %61 = arith.mulf %56, %60 : vector<2x8x64xf32>
    %62 = arith.addf %46, %61 : vector<2x8x64xf32>
    %c0_37 = arith.constant 0 : index
    %c0_38 = arith.constant 0 : index
    %c0_39 = arith.constant 0 : index
    %c8 = arith.constant 8 : index
    %63 = vector.load %arg1[%c0_37, %c0_38, %c0_39, %c8] : memref<2x4x16x80xf32, #tpu.memory_space<vmem>>, vector<2x1x8x64xf32>
    %64 = vector.shape_cast %63 : vector<2x1x8x64xf32> to vector<2x8x64xf32>
    %65 = vector.extract_strided_slice %27 {offsets = [0, 2, 0], sizes = [1, 1, 64], strides = [1, 1, 1]} : vector<5x5x64xf32> to vector<1x1x64xf32>
    %66 = vector.shape_cast %65 : vector<1x1x64xf32> to vector<1x64xf32>
    %67 = vector.shape_cast %66 : vector<1x64xf32> to vector<1x1x64xf32>
    %68 = vector.broadcast %67 : vector<1x1x64xf32> to vector<2x8x64xf32>
    %69 = arith.mulf %64, %68 : vector<2x8x64xf32>
    %70 = arith.addf %54, %69 : vector<2x8x64xf32>
    %c0_40 = arith.constant 0 : index
    %c0_41 = arith.constant 0 : index
    %c0_42 = arith.constant 0 : index
    %c8_43 = arith.constant 8 : index
    %71 = vector.load %arg12[%c0_40, %c0_41, %c0_42, %c8_43] : memref<2x4x16x80xf32, #tpu.memory_space<vmem>>, vector<2x1x8x64xf32>
    %72 = vector.shape_cast %71 : vector<2x1x8x64xf32> to vector<2x8x64xf32>
    %73 = vector.extract_strided_slice %28 {offsets = [0, 2, 0], sizes = [1, 1, 64], strides = [1, 1, 1]} : vector<5x5x64xf32> to vector<1x1x64xf32>
    %74 = vector.shape_cast %73 : vector<1x1x64xf32> to vector<1x64xf32>
    %75 = vector.shape_cast %74 : vector<1x64xf32> to vector<1x1x64xf32>
    %76 = vector.broadcast %75 : vector<1x1x64xf32> to vector<2x8x64xf32>
    %77 = arith.mulf %72, %76 : vector<2x8x64xf32>
    %78 = arith.addf %62, %77 : vector<2x8x64xf32>
    %c0_44 = arith.constant 0 : index
    %c1_45 = arith.constant 1 : index
    %c0_46 = arith.constant 0 : index
    %c8_47 = arith.constant 8 : index
    %79 = vector.load %arg1[%c0_44, %c1_45, %c0_46, %c8_47] : memref<2x4x16x80xf32, #tpu.memory_space<vmem>>, vector<2x1x8x64xf32>
    %80 = vector.shape_cast %79 : vector<2x1x8x64xf32> to vector<2x8x64xf32>
    %81 = vector.extract_strided_slice %27 {offsets = [0, 3, 0], sizes = [1, 1, 64], strides = [1, 1, 1]} : vector<5x5x64xf32> to vector<1x1x64xf32>
    %82 = vector.shape_cast %81 : vector<1x1x64xf32> to vector<1x64xf32>
    %83 = vector.shape_cast %82 : vector<1x64xf32> to vector<1x1x64xf32>
    %84 = vector.broadcast %83 : vector<1x1x64xf32> to vector<2x8x64xf32>
    %85 = arith.mulf %80, %84 : vector<2x8x64xf32>
    %86 = arith.addf %70, %85 : vector<2x8x64xf32>
    %c0_48 = arith.constant 0 : index
    %c1_49 = arith.constant 1 : index
    %c0_50 = arith.constant 0 : index
    %c8_51 = arith.constant 8 : index
    %87 = vector.load %arg12[%c0_48, %c1_49, %c0_50, %c8_51] : memref<2x4x16x80xf32, #tpu.memory_space<vmem>>, vector<2x1x8x64xf32>
    %88 = vector.shape_cast %87 : vector<2x1x8x64xf32> to vector<2x8x64xf32>
    %89 = vector.extract_strided_slice %28 {offsets = [0, 3, 0], sizes = [1, 1, 64], strides = [1, 1, 1]} : vector<5x5x64xf32> to vector<1x1x64xf32>
    %90 = vector.shape_cast %89 : vector<1x1x64xf32> to vector<1x64xf32>
    %91 = vector.shape_cast %90 : vector<1x64xf32> to vector<1x1x64xf32>
    %92 = vector.broadcast %91 : vector<1x1x64xf32> to vector<2x8x64xf32>
    %93 = arith.mulf %88, %92 : vector<2x8x64xf32>
    %94 = arith.addf %78, %93 : vector<2x8x64xf32>
    %c0_52 = arith.constant 0 : index
    %c0_53 = arith.constant 0 : index
    %c0_54 = arith.constant 0 : index
    %c16 = arith.constant 16 : index
    %95 = vector.load %arg1[%c0_52, %c0_53, %c0_54, %c16] : memref<2x4x16x80xf32, #tpu.memory_space<vmem>>, vector<2x1x8x64xf32>
    %96 = vector.shape_cast %95 : vector<2x1x8x64xf32> to vector<2x8x64xf32>
    %97 = vector.extract_strided_slice %27 {offsets = [0, 4, 0], sizes = [1, 1, 64], strides = [1, 1, 1]} : vector<5x5x64xf32> to vector<1x1x64xf32>
    %98 = vector.shape_cast %97 : vector<1x1x64xf32> to vector<1x64xf32>
    %99 = vector.shape_cast %98 : vector<1x64xf32> to vector<1x1x64xf32>
    %100 = vector.broadcast %99 : vector<1x1x64xf32> to vector<2x8x64xf32>
    %101 = arith.mulf %96, %100 : vector<2x8x64xf32>
    %102 = arith.addf %86, %101 : vector<2x8x64xf32>
    %c0_55 = arith.constant 0 : index
    %c0_56 = arith.constant 0 : index
    %c0_57 = arith.constant 0 : index
    %c16_58 = arith.constant 16 : index
    %103 = vector.load %arg12[%c0_55, %c0_56, %c0_57, %c16_58] : memref<2x4x16x80xf32, #tpu.memory_space<vmem>>, vector<2x1x8x64xf32>
    %104 = vector.shape_cast %103 : vector<2x1x8x64xf32> to vector<2x8x64xf32>
    %105 = vector.extract_strided_slice %28 {offsets = [0, 4, 0], sizes = [1, 1, 64], strides = [1, 1, 1]} : vector<5x5x64xf32> to vector<1x1x64xf32>
    %106 = vector.shape_cast %105 : vector<1x1x64xf32> to vector<1x64xf32>
    %107 = vector.shape_cast %106 : vector<1x64xf32> to vector<1x1x64xf32>
    %108 = vector.broadcast %107 : vector<1x1x64xf32> to vector<2x8x64xf32>
    %109 = arith.mulf %104, %108 : vector<2x8x64xf32>
    %110 = arith.addf %94, %109 : vector<2x8x64xf32>
    %c0_59 = arith.constant 0 : index
    %c2 = arith.constant 2 : index
    %c0_60 = arith.constant 0 : index
    %c0_61 = arith.constant 0 : index
    %111 = vector.load %arg1[%c0_59, %c2, %c0_60, %c0_61] : memref<2x4x16x80xf32, #tpu.memory_space<vmem>>, vector<2x1x8x64xf32>
    %112 = vector.shape_cast %111 : vector<2x1x8x64xf32> to vector<2x8x64xf32>
    %113 = vector.extract_strided_slice %27 {offsets = [1, 0, 0], sizes = [1, 1, 64], strides = [1, 1, 1]} : vector<5x5x64xf32> to vector<1x1x64xf32>
    %114 = vector.shape_cast %113 : vector<1x1x64xf32> to vector<1x64xf32>
    %115 = vector.shape_cast %114 : vector<1x64xf32> to vector<1x1x64xf32>
    %116 = vector.broadcast %115 : vector<1x1x64xf32> to vector<2x8x64xf32>
    %117 = arith.mulf %112, %116 : vector<2x8x64xf32>
    %118 = arith.addf %102, %117 : vector<2x8x64xf32>
    %c0_62 = arith.constant 0 : index
    %c2_63 = arith.constant 2 : index
    %c0_64 = arith.constant 0 : index
    %c0_65 = arith.constant 0 : index
    %119 = vector.load %arg12[%c0_62, %c2_63, %c0_64, %c0_65] : memref<2x4x16x80xf32, #tpu.memory_space<vmem>>, vector<2x1x8x64xf32>
    %120 = vector.shape_cast %119 : vector<2x1x8x64xf32> to vector<2x8x64xf32>
    %121 = vector.extract_strided_slice %28 {offsets = [1, 0, 0], sizes = [1, 1, 64], strides = [1, 1, 1]} : vector<5x5x64xf32> to vector<1x1x64xf32>
    %122 = vector.shape_cast %121 : vector<1x1x64xf32> to vector<1x64xf32>
    %123 = vector.shape_cast %122 : vector<1x64xf32> to vector<1x1x64xf32>
    %124 = vector.broadcast %123 : vector<1x1x64xf32> to vector<2x8x64xf32>
    %125 = arith.mulf %120, %124 : vector<2x8x64xf32>
    %126 = arith.addf %110, %125 : vector<2x8x64xf32>
    %c0_66 = arith.constant 0 : index
    %c3 = arith.constant 3 : index
    %c0_67 = arith.constant 0 : index
    %c0_68 = arith.constant 0 : index
    %127 = vector.load %arg1[%c0_66, %c3, %c0_67, %c0_68] : memref<2x4x16x80xf32, #tpu.memory_space<vmem>>, vector<2x1x8x64xf32>
    %128 = vector.shape_cast %127 : vector<2x1x8x64xf32> to vector<2x8x64xf32>
    %129 = vector.extract_strided_slice %27 {offsets = [1, 1, 0], sizes = [1, 1, 64], strides = [1, 1, 1]} : vector<5x5x64xf32> to vector<1x1x64xf32>
    %130 = vector.shape_cast %129 : vector<1x1x64xf32> to vector<1x64xf32>
    %131 = vector.shape_cast %130 : vector<1x64xf32> to vector<1x1x64xf32>
    %132 = vector.broadcast %131 : vector<1x1x64xf32> to vector<2x8x64xf32>
    %133 = arith.mulf %128, %132 : vector<2x8x64xf32>
    %134 = arith.addf %118, %133 : vector<2x8x64xf32>
    %c0_69 = arith.constant 0 : index
    %c3_70 = arith.constant 3 : index
    %c0_71 = arith.constant 0 : index
    %c0_72 = arith.constant 0 : index
    %135 = vector.load %arg12[%c0_69, %c3_70, %c0_71, %c0_72] : memref<2x4x16x80xf32, #tpu.memory_space<vmem>>, vector<2x1x8x64xf32>
    %136 = vector.shape_cast %135 : vector<2x1x8x64xf32> to vector<2x8x64xf32>
    %137 = vector.extract_strided_slice %28 {offsets = [1, 1, 0], sizes = [1, 1, 64], strides = [1, 1, 1]} : vector<5x5x64xf32> to vector<1x1x64xf32>
    %138 = vector.shape_cast %137 : vector<1x1x64xf32> to vector<1x64xf32>
    %139 = vector.shape_cast %138 : vector<1x64xf32> to vector<1x1x64xf32>
    %140 = vector.broadcast %139 : vector<1x1x64xf32> to vector<2x8x64xf32>
    %141 = arith.mulf %136, %140 : vector<2x8x64xf32>
    %142 = arith.addf %126, %141 : vector<2x8x64xf32>
    %c0_73 = arith.constant 0 : index
    %c2_74 = arith.constant 2 : index
    %c0_75 = arith.constant 0 : index
    %c8_76 = arith.constant 8 : index
    %143 = vector.load %arg1[%c0_73, %c2_74, %c0_75, %c8_76] : memref<2x4x16x80xf32, #tpu.memory_space<vmem>>, vector<2x1x8x64xf32>
    %144 = vector.shape_cast %143 : vector<2x1x8x64xf32> to vector<2x8x64xf32>
    %145 = vector.extract_strided_slice %27 {offsets = [1, 2, 0], sizes = [1, 1, 64], strides = [1, 1, 1]} : vector<5x5x64xf32> to vector<1x1x64xf32>
    %146 = vector.shape_cast %145 : vector<1x1x64xf32> to vector<1x64xf32>
    %147 = vector.shape_cast %146 : vector<1x64xf32> to vector<1x1x64xf32>
    %148 = vector.broadcast %147 : vector<1x1x64xf32> to vector<2x8x64xf32>
    %149 = arith.mulf %144, %148 : vector<2x8x64xf32>
    %150 = arith.addf %134, %149 : vector<2x8x64xf32>
    %c0_77 = arith.constant 0 : index
    %c2_78 = arith.constant 2 : index
    %c0_79 = arith.constant 0 : index
    %c8_80 = arith.constant 8 : index
    %151 = vector.load %arg12[%c0_77, %c2_78, %c0_79, %c8_80] : memref<2x4x16x80xf32, #tpu.memory_space<vmem>>, vector<2x1x8x64xf32>
    %152 = vector.shape_cast %151 : vector<2x1x8x64xf32> to vector<2x8x64xf32>
    %153 = vector.extract_strided_slice %28 {offsets = [1, 2, 0], sizes = [1, 1, 64], strides = [1, 1, 1]} : vector<5x5x64xf32> to vector<1x1x64xf32>
    %154 = vector.shape_cast %153 : vector<1x1x64xf32> to vector<1x64xf32>
    %155 = vector.shape_cast %154 : vector<1x64xf32> to vector<1x1x64xf32>
    %156 = vector.broadcast %155 : vector<1x1x64xf32> to vector<2x8x64xf32>
    %157 = arith.mulf %152, %156 : vector<2x8x64xf32>
    %158 = arith.addf %142, %157 : vector<2x8x64xf32>
    %c0_81 = arith.constant 0 : index
    %c3_82 = arith.constant 3 : index
    %c0_83 = arith.constant 0 : index
    %c8_84 = arith.constant 8 : index
    %159 = vector.load %arg1[%c0_81, %c3_82, %c0_83, %c8_84] : memref<2x4x16x80xf32, #tpu.memory_space<vmem>>, vector<2x1x8x64xf32>
    %160 = vector.shape_cast %159 : vector<2x1x8x64xf32> to vector<2x8x64xf32>
    %161 = vector.extract_strided_slice %27 {offsets = [1, 3, 0], sizes = [1, 1, 64], strides = [1, 1, 1]} : vector<5x5x64xf32> to vector<1x1x64xf32>
    %162 = vector.shape_cast %161 : vector<1x1x64xf32> to vector<1x64xf32>
    %163 = vector.shape_cast %162 : vector<1x64xf32> to vector<1x1x64xf32>
    %164 = vector.broadcast %163 : vector<1x1x64xf32> to vector<2x8x64xf32>
    %165 = arith.mulf %160, %164 : vector<2x8x64xf32>
    %166 = arith.addf %150, %165 : vector<2x8x64xf32>
    %c0_85 = arith.constant 0 : index
    %c3_86 = arith.constant 3 : index
    %c0_87 = arith.constant 0 : index
    %c8_88 = arith.constant 8 : index
    %167 = vector.load %arg12[%c0_85, %c3_86, %c0_87, %c8_88] : memref<2x4x16x80xf32, #tpu.memory_space<vmem>>, vector<2x1x8x64xf32>
    %168 = vector.shape_cast %167 : vector<2x1x8x64xf32> to vector<2x8x64xf32>
    %169 = vector.extract_strided_slice %28 {offsets = [1, 3, 0], sizes = [1, 1, 64], strides = [1, 1, 1]} : vector<5x5x64xf32> to vector<1x1x64xf32>
    %170 = vector.shape_cast %169 : vector<1x1x64xf32> to vector<1x64xf32>
    %171 = vector.shape_cast %170 : vector<1x64xf32> to vector<1x1x64xf32>
    %172 = vector.broadcast %171 : vector<1x1x64xf32> to vector<2x8x64xf32>
    %173 = arith.mulf %168, %172 : vector<2x8x64xf32>
    %174 = arith.addf %158, %173 : vector<2x8x64xf32>
    %c0_89 = arith.constant 0 : index
    %c2_90 = arith.constant 2 : index
    %c0_91 = arith.constant 0 : index
    %c16_92 = arith.constant 16 : index
    %175 = vector.load %arg1[%c0_89, %c2_90, %c0_91, %c16_92] : memref<2x4x16x80xf32, #tpu.memory_space<vmem>>, vector<2x1x8x64xf32>
    %176 = vector.shape_cast %175 : vector<2x1x8x64xf32> to vector<2x8x64xf32>
    %177 = vector.extract_strided_slice %27 {offsets = [1, 4, 0], sizes = [1, 1, 64], strides = [1, 1, 1]} : vector<5x5x64xf32> to vector<1x1x64xf32>
    %178 = vector.shape_cast %177 : vector<1x1x64xf32> to vector<1x64xf32>
    %179 = vector.shape_cast %178 : vector<1x64xf32> to vector<1x1x64xf32>
    %180 = vector.broadcast %179 : vector<1x1x64xf32> to vector<2x8x64xf32>
    %181 = arith.mulf %176, %180 : vector<2x8x64xf32>
    %182 = arith.addf %166, %181 : vector<2x8x64xf32>
    %c0_93 = arith.constant 0 : index
    %c2_94 = arith.constant 2 : index
    %c0_95 = arith.constant 0 : index
    %c16_96 = arith.constant 16 : index
    %183 = vector.load %arg12[%c0_93, %c2_94, %c0_95, %c16_96] : memref<2x4x16x80xf32, #tpu.memory_space<vmem>>, vector<2x1x8x64xf32>
    %184 = vector.shape_cast %183 : vector<2x1x8x64xf32> to vector<2x8x64xf32>
    %185 = vector.extract_strided_slice %28 {offsets = [1, 4, 0], sizes = [1, 1, 64], strides = [1, 1, 1]} : vector<5x5x64xf32> to vector<1x1x64xf32>
    %186 = vector.shape_cast %185 : vector<1x1x64xf32> to vector<1x64xf32>
    %187 = vector.shape_cast %186 : vector<1x64xf32> to vector<1x1x64xf32>
    %188 = vector.broadcast %187 : vector<1x1x64xf32> to vector<2x8x64xf32>
    %189 = arith.mulf %184, %188 : vector<2x8x64xf32>
    %190 = arith.addf %174, %189 : vector<2x8x64xf32>
    %c0_97 = arith.constant 0 : index
    %c0_98 = arith.constant 0 : index
    %c1_99 = arith.constant 1 : index
    %c0_100 = arith.constant 0 : index
    %191 = vector.load %arg1[%c0_97, %c0_98, %c1_99, %c0_100] : memref<2x4x16x80xf32, #tpu.memory_space<vmem>>, vector<2x1x8x64xf32>
    %192 = vector.shape_cast %191 : vector<2x1x8x64xf32> to vector<2x8x64xf32>
    %193 = vector.extract_strided_slice %27 {offsets = [2, 0, 0], sizes = [1, 1, 64], strides = [1, 1, 1]} : vector<5x5x64xf32> to vector<1x1x64xf32>
    %194 = vector.shape_cast %193 : vector<1x1x64xf32> to vector<1x64xf32>
    %195 = vector.shape_cast %194 : vector<1x64xf32> to vector<1x1x64xf32>
    %196 = vector.broadcast %195 : vector<1x1x64xf32> to vector<2x8x64xf32>
    %197 = arith.mulf %192, %196 : vector<2x8x64xf32>
    %198 = arith.addf %182, %197 : vector<2x8x64xf32>
    %c0_101 = arith.constant 0 : index
    %c0_102 = arith.constant 0 : index
    %c1_103 = arith.constant 1 : index
    %c0_104 = arith.constant 0 : index
    %199 = vector.load %arg12[%c0_101, %c0_102, %c1_103, %c0_104] : memref<2x4x16x80xf32, #tpu.memory_space<vmem>>, vector<2x1x8x64xf32>
    %200 = vector.shape_cast %199 : vector<2x1x8x64xf32> to vector<2x8x64xf32>
    %201 = vector.extract_strided_slice %28 {offsets = [2, 0, 0], sizes = [1, 1, 64], strides = [1, 1, 1]} : vector<5x5x64xf32> to vector<1x1x64xf32>
    %202 = vector.shape_cast %201 : vector<1x1x64xf32> to vector<1x64xf32>
    %203 = vector.shape_cast %202 : vector<1x64xf32> to vector<1x1x64xf32>
    %204 = vector.broadcast %203 : vector<1x1x64xf32> to vector<2x8x64xf32>
    %205 = arith.mulf %200, %204 : vector<2x8x64xf32>
    %206 = arith.addf %190, %205 : vector<2x8x64xf32>
    %c0_105 = arith.constant 0 : index
    %c1_106 = arith.constant 1 : index
    %c1_107 = arith.constant 1 : index
    %c0_108 = arith.constant 0 : index
    %207 = vector.load %arg1[%c0_105, %c1_106, %c1_107, %c0_108] : memref<2x4x16x80xf32, #tpu.memory_space<vmem>>, vector<2x1x8x64xf32>
    %208 = vector.shape_cast %207 : vector<2x1x8x64xf32> to vector<2x8x64xf32>
    %209 = vector.extract_strided_slice %27 {offsets = [2, 1, 0], sizes = [1, 1, 64], strides = [1, 1, 1]} : vector<5x5x64xf32> to vector<1x1x64xf32>
    %210 = vector.shape_cast %209 : vector<1x1x64xf32> to vector<1x64xf32>
    %211 = vector.shape_cast %210 : vector<1x64xf32> to vector<1x1x64xf32>
    %212 = vector.broadcast %211 : vector<1x1x64xf32> to vector<2x8x64xf32>
    %213 = arith.mulf %208, %212 : vector<2x8x64xf32>
    %214 = arith.addf %198, %213 : vector<2x8x64xf32>
    %c0_109 = arith.constant 0 : index
    %c1_110 = arith.constant 1 : index
    %c1_111 = arith.constant 1 : index
    %c0_112 = arith.constant 0 : index
    %215 = vector.load %arg12[%c0_109, %c1_110, %c1_111, %c0_112] : memref<2x4x16x80xf32, #tpu.memory_space<vmem>>, vector<2x1x8x64xf32>
    %216 = vector.shape_cast %215 : vector<2x1x8x64xf32> to vector<2x8x64xf32>
    %217 = vector.extract_strided_slice %28 {offsets = [2, 1, 0], sizes = [1, 1, 64], strides = [1, 1, 1]} : vector<5x5x64xf32> to vector<1x1x64xf32>
    %218 = vector.shape_cast %217 : vector<1x1x64xf32> to vector<1x64xf32>
    %219 = vector.shape_cast %218 : vector<1x64xf32> to vector<1x1x64xf32>
    %220 = vector.broadcast %219 : vector<1x1x64xf32> to vector<2x8x64xf32>
    %221 = arith.mulf %216, %220 : vector<2x8x64xf32>
    %222 = arith.addf %206, %221 : vector<2x8x64xf32>
    %c0_113 = arith.constant 0 : index
    %c0_114 = arith.constant 0 : index
    %c1_115 = arith.constant 1 : index
    %c8_116 = arith.constant 8 : index
    %223 = vector.load %arg1[%c0_113, %c0_114, %c1_115, %c8_116] : memref<2x4x16x80xf32, #tpu.memory_space<vmem>>, vector<2x1x8x64xf32>
    %224 = vector.shape_cast %223 : vector<2x1x8x64xf32> to vector<2x8x64xf32>
    %225 = vector.extract_strided_slice %27 {offsets = [2, 2, 0], sizes = [1, 1, 64], strides = [1, 1, 1]} : vector<5x5x64xf32> to vector<1x1x64xf32>
    %226 = vector.shape_cast %225 : vector<1x1x64xf32> to vector<1x64xf32>
    %227 = vector.shape_cast %226 : vector<1x64xf32> to vector<1x1x64xf32>
    %228 = vector.broadcast %227 : vector<1x1x64xf32> to vector<2x8x64xf32>
    %229 = arith.mulf %224, %228 : vector<2x8x64xf32>
    %230 = arith.addf %214, %229 : vector<2x8x64xf32>
    %c0_117 = arith.constant 0 : index
    %c0_118 = arith.constant 0 : index
    %c1_119 = arith.constant 1 : index
    %c8_120 = arith.constant 8 : index
    %231 = vector.load %arg12[%c0_117, %c0_118, %c1_119, %c8_120] : memref<2x4x16x80xf32, #tpu.memory_space<vmem>>, vector<2x1x8x64xf32>
    %232 = vector.shape_cast %231 : vector<2x1x8x64xf32> to vector<2x8x64xf32>
    %233 = vector.extract_strided_slice %28 {offsets = [2, 2, 0], sizes = [1, 1, 64], strides = [1, 1, 1]} : vector<5x5x64xf32> to vector<1x1x64xf32>
    %234 = vector.shape_cast %233 : vector<1x1x64xf32> to vector<1x64xf32>
    %235 = vector.shape_cast %234 : vector<1x64xf32> to vector<1x1x64xf32>
    %236 = vector.broadcast %235 : vector<1x1x64xf32> to vector<2x8x64xf32>
    %237 = arith.mulf %232, %236 : vector<2x8x64xf32>
    %238 = arith.addf %222, %237 : vector<2x8x64xf32>
    %c0_121 = arith.constant 0 : index
    %c1_122 = arith.constant 1 : index
    %c1_123 = arith.constant 1 : index
    %c8_124 = arith.constant 8 : index
    %239 = vector.load %arg1[%c0_121, %c1_122, %c1_123, %c8_124] : memref<2x4x16x80xf32, #tpu.memory_space<vmem>>, vector<2x1x8x64xf32>
    %240 = vector.shape_cast %239 : vector<2x1x8x64xf32> to vector<2x8x64xf32>
    %241 = vector.extract_strided_slice %27 {offsets = [2, 3, 0], sizes = [1, 1, 64], strides = [1, 1, 1]} : vector<5x5x64xf32> to vector<1x1x64xf32>
    %242 = vector.shape_cast %241 : vector<1x1x64xf32> to vector<1x64xf32>
    %243 = vector.shape_cast %242 : vector<1x64xf32> to vector<1x1x64xf32>
    %244 = vector.broadcast %243 : vector<1x1x64xf32> to vector<2x8x64xf32>
    %245 = arith.mulf %240, %244 : vector<2x8x64xf32>
    %246 = arith.addf %230, %245 : vector<2x8x64xf32>
    %c0_125 = arith.constant 0 : index
    %c1_126 = arith.constant 1 : index
    %c1_127 = arith.constant 1 : index
    %c8_128 = arith.constant 8 : index
    %247 = vector.load %arg12[%c0_125, %c1_126, %c1_127, %c8_128] : memref<2x4x16x80xf32, #tpu.memory_space<vmem>>, vector<2x1x8x64xf32>
    %248 = vector.shape_cast %247 : vector<2x1x8x64xf32> to vector<2x8x64xf32>
    %249 = vector.extract_strided_slice %28 {offsets = [2, 3, 0], sizes = [1, 1, 64], strides = [1, 1, 1]} : vector<5x5x64xf32> to vector<1x1x64xf32>
    %250 = vector.shape_cast %249 : vector<1x1x64xf32> to vector<1x64xf32>
    %251 = vector.shape_cast %250 : vector<1x64xf32> to vector<1x1x64xf32>
    %252 = vector.broadcast %251 : vector<1x1x64xf32> to vector<2x8x64xf32>
    %253 = arith.mulf %248, %252 : vector<2x8x64xf32>
    %254 = arith.addf %238, %253 : vector<2x8x64xf32>
    %c0_129 = arith.constant 0 : index
    %c0_130 = arith.constant 0 : index
    %c1_131 = arith.constant 1 : index
    %c16_132 = arith.constant 16 : index
    %255 = vector.load %arg1[%c0_129, %c0_130, %c1_131, %c16_132] : memref<2x4x16x80xf32, #tpu.memory_space<vmem>>, vector<2x1x8x64xf32>
    %256 = vector.shape_cast %255 : vector<2x1x8x64xf32> to vector<2x8x64xf32>
    %257 = vector.extract_strided_slice %27 {offsets = [2, 4, 0], sizes = [1, 1, 64], strides = [1, 1, 1]} : vector<5x5x64xf32> to vector<1x1x64xf32>
    %258 = vector.shape_cast %257 : vector<1x1x64xf32> to vector<1x64xf32>
    %259 = vector.shape_cast %258 : vector<1x64xf32> to vector<1x1x64xf32>
    %260 = vector.broadcast %259 : vector<1x1x64xf32> to vector<2x8x64xf32>
    %261 = arith.mulf %256, %260 : vector<2x8x64xf32>
    %262 = arith.addf %246, %261 : vector<2x8x64xf32>
    %c0_133 = arith.constant 0 : index
    %c0_134 = arith.constant 0 : index
    %c1_135 = arith.constant 1 : index
    %c16_136 = arith.constant 16 : index
    %263 = vector.load %arg12[%c0_133, %c0_134, %c1_135, %c16_136] : memref<2x4x16x80xf32, #tpu.memory_space<vmem>>, vector<2x1x8x64xf32>
    %264 = vector.shape_cast %263 : vector<2x1x8x64xf32> to vector<2x8x64xf32>
    %265 = vector.extract_strided_slice %28 {offsets = [2, 4, 0], sizes = [1, 1, 64], strides = [1, 1, 1]} : vector<5x5x64xf32> to vector<1x1x64xf32>
    %266 = vector.shape_cast %265 : vector<1x1x64xf32> to vector<1x64xf32>
    %267 = vector.shape_cast %266 : vector<1x64xf32> to vector<1x1x64xf32>
    %268 = vector.broadcast %267 : vector<1x1x64xf32> to vector<2x8x64xf32>
    %269 = arith.mulf %264, %268 : vector<2x8x64xf32>
    %270 = arith.addf %254, %269 : vector<2x8x64xf32>
    %c0_137 = arith.constant 0 : index
    %c2_138 = arith.constant 2 : index
    %c1_139 = arith.constant 1 : index
    %c0_140 = arith.constant 0 : index
    %271 = vector.load %arg1[%c0_137, %c2_138, %c1_139, %c0_140] : memref<2x4x16x80xf32, #tpu.memory_space<vmem>>, vector<2x1x8x64xf32>
    %272 = vector.shape_cast %271 : vector<2x1x8x64xf32> to vector<2x8x64xf32>
    %273 = vector.extract_strided_slice %27 {offsets = [3, 0, 0], sizes = [1, 1, 64], strides = [1, 1, 1]} : vector<5x5x64xf32> to vector<1x1x64xf32>
    %274 = vector.shape_cast %273 : vector<1x1x64xf32> to vector<1x64xf32>
    %275 = vector.shape_cast %274 : vector<1x64xf32> to vector<1x1x64xf32>
    %276 = vector.broadcast %275 : vector<1x1x64xf32> to vector<2x8x64xf32>
    %277 = arith.mulf %272, %276 : vector<2x8x64xf32>
    %278 = arith.addf %262, %277 : vector<2x8x64xf32>
    %c0_141 = arith.constant 0 : index
    %c2_142 = arith.constant 2 : index
    %c1_143 = arith.constant 1 : index
    %c0_144 = arith.constant 0 : index
    %279 = vector.load %arg12[%c0_141, %c2_142, %c1_143, %c0_144] : memref<2x4x16x80xf32, #tpu.memory_space<vmem>>, vector<2x1x8x64xf32>
    %280 = vector.shape_cast %279 : vector<2x1x8x64xf32> to vector<2x8x64xf32>
    %281 = vector.extract_strided_slice %28 {offsets = [3, 0, 0], sizes = [1, 1, 64], strides = [1, 1, 1]} : vector<5x5x64xf32> to vector<1x1x64xf32>
    %282 = vector.shape_cast %281 : vector<1x1x64xf32> to vector<1x64xf32>
    %283 = vector.shape_cast %282 : vector<1x64xf32> to vector<1x1x64xf32>
    %284 = vector.broadcast %283 : vector<1x1x64xf32> to vector<2x8x64xf32>
    %285 = arith.mulf %280, %284 : vector<2x8x64xf32>
    %286 = arith.addf %270, %285 : vector<2x8x64xf32>
    %c0_145 = arith.constant 0 : index
    %c3_146 = arith.constant 3 : index
    %c1_147 = arith.constant 1 : index
    %c0_148 = arith.constant 0 : index
    %287 = vector.load %arg1[%c0_145, %c3_146, %c1_147, %c0_148] : memref<2x4x16x80xf32, #tpu.memory_space<vmem>>, vector<2x1x8x64xf32>
    %288 = vector.shape_cast %287 : vector<2x1x8x64xf32> to vector<2x8x64xf32>
    %289 = vector.extract_strided_slice %27 {offsets = [3, 1, 0], sizes = [1, 1, 64], strides = [1, 1, 1]} : vector<5x5x64xf32> to vector<1x1x64xf32>
    %290 = vector.shape_cast %289 : vector<1x1x64xf32> to vector<1x64xf32>
    %291 = vector.shape_cast %290 : vector<1x64xf32> to vector<1x1x64xf32>
    %292 = vector.broadcast %291 : vector<1x1x64xf32> to vector<2x8x64xf32>
    %293 = arith.mulf %288, %292 : vector<2x8x64xf32>
    %294 = arith.addf %278, %293 : vector<2x8x64xf32>
    %c0_149 = arith.constant 0 : index
    %c3_150 = arith.constant 3 : index
    %c1_151 = arith.constant 1 : index
    %c0_152 = arith.constant 0 : index
    %295 = vector.load %arg12[%c0_149, %c3_150, %c1_151, %c0_152] : memref<2x4x16x80xf32, #tpu.memory_space<vmem>>, vector<2x1x8x64xf32>
    %296 = vector.shape_cast %295 : vector<2x1x8x64xf32> to vector<2x8x64xf32>
    %297 = vector.extract_strided_slice %28 {offsets = [3, 1, 0], sizes = [1, 1, 64], strides = [1, 1, 1]} : vector<5x5x64xf32> to vector<1x1x64xf32>
    %298 = vector.shape_cast %297 : vector<1x1x64xf32> to vector<1x64xf32>
    %299 = vector.shape_cast %298 : vector<1x64xf32> to vector<1x1x64xf32>
    %300 = vector.broadcast %299 : vector<1x1x64xf32> to vector<2x8x64xf32>
    %301 = arith.mulf %296, %300 : vector<2x8x64xf32>
    %302 = arith.addf %286, %301 : vector<2x8x64xf32>
    %c0_153 = arith.constant 0 : index
    %c2_154 = arith.constant 2 : index
    %c1_155 = arith.constant 1 : index
    %c8_156 = arith.constant 8 : index
    %303 = vector.load %arg1[%c0_153, %c2_154, %c1_155, %c8_156] : memref<2x4x16x80xf32, #tpu.memory_space<vmem>>, vector<2x1x8x64xf32>
    %304 = vector.shape_cast %303 : vector<2x1x8x64xf32> to vector<2x8x64xf32>
    %305 = vector.extract_strided_slice %27 {offsets = [3, 2, 0], sizes = [1, 1, 64], strides = [1, 1, 1]} : vector<5x5x64xf32> to vector<1x1x64xf32>
    %306 = vector.shape_cast %305 : vector<1x1x64xf32> to vector<1x64xf32>
    %307 = vector.shape_cast %306 : vector<1x64xf32> to vector<1x1x64xf32>
    %308 = vector.broadcast %307 : vector<1x1x64xf32> to vector<2x8x64xf32>
    %309 = arith.mulf %304, %308 : vector<2x8x64xf32>
    %310 = arith.addf %294, %309 : vector<2x8x64xf32>
    %c0_157 = arith.constant 0 : index
    %c2_158 = arith.constant 2 : index
    %c1_159 = arith.constant 1 : index
    %c8_160 = arith.constant 8 : index
    %311 = vector.load %arg12[%c0_157, %c2_158, %c1_159, %c8_160] : memref<2x4x16x80xf32, #tpu.memory_space<vmem>>, vector<2x1x8x64xf32>
    %312 = vector.shape_cast %311 : vector<2x1x8x64xf32> to vector<2x8x64xf32>
    %313 = vector.extract_strided_slice %28 {offsets = [3, 2, 0], sizes = [1, 1, 64], strides = [1, 1, 1]} : vector<5x5x64xf32> to vector<1x1x64xf32>
    %314 = vector.shape_cast %313 : vector<1x1x64xf32> to vector<1x64xf32>
    %315 = vector.shape_cast %314 : vector<1x64xf32> to vector<1x1x64xf32>
    %316 = vector.broadcast %315 : vector<1x1x64xf32> to vector<2x8x64xf32>
    %317 = arith.mulf %312, %316 : vector<2x8x64xf32>
    %318 = arith.addf %302, %317 : vector<2x8x64xf32>
    %c0_161 = arith.constant 0 : index
    %c3_162 = arith.constant 3 : index
    %c1_163 = arith.constant 1 : index
    %c8_164 = arith.constant 8 : index
    %319 = vector.load %arg1[%c0_161, %c3_162, %c1_163, %c8_164] : memref<2x4x16x80xf32, #tpu.memory_space<vmem>>, vector<2x1x8x64xf32>
    %320 = vector.shape_cast %319 : vector<2x1x8x64xf32> to vector<2x8x64xf32>
    %321 = vector.extract_strided_slice %27 {offsets = [3, 3, 0], sizes = [1, 1, 64], strides = [1, 1, 1]} : vector<5x5x64xf32> to vector<1x1x64xf32>
    %322 = vector.shape_cast %321 : vector<1x1x64xf32> to vector<1x64xf32>
    %323 = vector.shape_cast %322 : vector<1x64xf32> to vector<1x1x64xf32>
    %324 = vector.broadcast %323 : vector<1x1x64xf32> to vector<2x8x64xf32>
    %325 = arith.mulf %320, %324 : vector<2x8x64xf32>
    %326 = arith.addf %310, %325 : vector<2x8x64xf32>
    %c0_165 = arith.constant 0 : index
    %c3_166 = arith.constant 3 : index
    %c1_167 = arith.constant 1 : index
    %c8_168 = arith.constant 8 : index
    %327 = vector.load %arg12[%c0_165, %c3_166, %c1_167, %c8_168] : memref<2x4x16x80xf32, #tpu.memory_space<vmem>>, vector<2x1x8x64xf32>
    %328 = vector.shape_cast %327 : vector<2x1x8x64xf32> to vector<2x8x64xf32>
    %329 = vector.extract_strided_slice %28 {offsets = [3, 3, 0], sizes = [1, 1, 64], strides = [1, 1, 1]} : vector<5x5x64xf32> to vector<1x1x64xf32>
    %330 = vector.shape_cast %329 : vector<1x1x64xf32> to vector<1x64xf32>
    %331 = vector.shape_cast %330 : vector<1x64xf32> to vector<1x1x64xf32>
    %332 = vector.broadcast %331 : vector<1x1x64xf32> to vector<2x8x64xf32>
    %333 = arith.mulf %328, %332 : vector<2x8x64xf32>
    %334 = arith.addf %318, %333 : vector<2x8x64xf32>
    %c0_169 = arith.constant 0 : index
    %c2_170 = arith.constant 2 : index
    %c1_171 = arith.constant 1 : index
    %c16_172 = arith.constant 16 : index
    %335 = vector.load %arg1[%c0_169, %c2_170, %c1_171, %c16_172] : memref<2x4x16x80xf32, #tpu.memory_space<vmem>>, vector<2x1x8x64xf32>
    %336 = vector.shape_cast %335 : vector<2x1x8x64xf32> to vector<2x8x64xf32>
    %337 = vector.extract_strided_slice %27 {offsets = [3, 4, 0], sizes = [1, 1, 64], strides = [1, 1, 1]} : vector<5x5x64xf32> to vector<1x1x64xf32>
    %338 = vector.shape_cast %337 : vector<1x1x64xf32> to vector<1x64xf32>
    %339 = vector.shape_cast %338 : vector<1x64xf32> to vector<1x1x64xf32>
    %340 = vector.broadcast %339 : vector<1x1x64xf32> to vector<2x8x64xf32>
    %341 = arith.mulf %336, %340 : vector<2x8x64xf32>
    %342 = arith.addf %326, %341 : vector<2x8x64xf32>
    %c0_173 = arith.constant 0 : index
    %c2_174 = arith.constant 2 : index
    %c1_175 = arith.constant 1 : index
    %c16_176 = arith.constant 16 : index
    %343 = vector.load %arg12[%c0_173, %c2_174, %c1_175, %c16_176] : memref<2x4x16x80xf32, #tpu.memory_space<vmem>>, vector<2x1x8x64xf32>
    %344 = vector.shape_cast %343 : vector<2x1x8x64xf32> to vector<2x8x64xf32>
    %345 = vector.extract_strided_slice %28 {offsets = [3, 4, 0], sizes = [1, 1, 64], strides = [1, 1, 1]} : vector<5x5x64xf32> to vector<1x1x64xf32>
    %346 = vector.shape_cast %345 : vector<1x1x64xf32> to vector<1x64xf32>
    %347 = vector.shape_cast %346 : vector<1x64xf32> to vector<1x1x64xf32>
    %348 = vector.broadcast %347 : vector<1x1x64xf32> to vector<2x8x64xf32>
    %349 = arith.mulf %344, %348 : vector<2x8x64xf32>
    %350 = arith.addf %334, %349 : vector<2x8x64xf32>
    %c0_177 = arith.constant 0 : index
    %c0_178 = arith.constant 0 : index
    %c2_179 = arith.constant 2 : index
    %c0_180 = arith.constant 0 : index
    %351 = vector.load %arg1[%c0_177, %c0_178, %c2_179, %c0_180] : memref<2x4x16x80xf32, #tpu.memory_space<vmem>>, vector<2x1x8x64xf32>
    %352 = vector.shape_cast %351 : vector<2x1x8x64xf32> to vector<2x8x64xf32>
    %353 = vector.extract_strided_slice %27 {offsets = [4, 0, 0], sizes = [1, 1, 64], strides = [1, 1, 1]} : vector<5x5x64xf32> to vector<1x1x64xf32>
    %354 = vector.shape_cast %353 : vector<1x1x64xf32> to vector<1x64xf32>
    %355 = vector.shape_cast %354 : vector<1x64xf32> to vector<1x1x64xf32>
    %356 = vector.broadcast %355 : vector<1x1x64xf32> to vector<2x8x64xf32>
    %357 = arith.mulf %352, %356 : vector<2x8x64xf32>
    %358 = arith.addf %342, %357 : vector<2x8x64xf32>
    %c0_181 = arith.constant 0 : index
    %c0_182 = arith.constant 0 : index
    %c2_183 = arith.constant 2 : index
    %c0_184 = arith.constant 0 : index
    %359 = vector.load %arg12[%c0_181, %c0_182, %c2_183, %c0_184] : memref<2x4x16x80xf32, #tpu.memory_space<vmem>>, vector<2x1x8x64xf32>
    %360 = vector.shape_cast %359 : vector<2x1x8x64xf32> to vector<2x8x64xf32>
    %361 = vector.extract_strided_slice %28 {offsets = [4, 0, 0], sizes = [1, 1, 64], strides = [1, 1, 1]} : vector<5x5x64xf32> to vector<1x1x64xf32>
    %362 = vector.shape_cast %361 : vector<1x1x64xf32> to vector<1x64xf32>
    %363 = vector.shape_cast %362 : vector<1x64xf32> to vector<1x1x64xf32>
    %364 = vector.broadcast %363 : vector<1x1x64xf32> to vector<2x8x64xf32>
    %365 = arith.mulf %360, %364 : vector<2x8x64xf32>
    %366 = arith.addf %350, %365 : vector<2x8x64xf32>
    %c0_185 = arith.constant 0 : index
    %c1_186 = arith.constant 1 : index
    %c2_187 = arith.constant 2 : index
    %c0_188 = arith.constant 0 : index
    %367 = vector.load %arg1[%c0_185, %c1_186, %c2_187, %c0_188] : memref<2x4x16x80xf32, #tpu.memory_space<vmem>>, vector<2x1x8x64xf32>
    %368 = vector.shape_cast %367 : vector<2x1x8x64xf32> to vector<2x8x64xf32>
    %369 = vector.extract_strided_slice %27 {offsets = [4, 1, 0], sizes = [1, 1, 64], strides = [1, 1, 1]} : vector<5x5x64xf32> to vector<1x1x64xf32>
    %370 = vector.shape_cast %369 : vector<1x1x64xf32> to vector<1x64xf32>
    %371 = vector.shape_cast %370 : vector<1x64xf32> to vector<1x1x64xf32>
    %372 = vector.broadcast %371 : vector<1x1x64xf32> to vector<2x8x64xf32>
    %373 = arith.mulf %368, %372 : vector<2x8x64xf32>
    %374 = arith.addf %358, %373 : vector<2x8x64xf32>
    %c0_189 = arith.constant 0 : index
    %c1_190 = arith.constant 1 : index
    %c2_191 = arith.constant 2 : index
    %c0_192 = arith.constant 0 : index
    %375 = vector.load %arg12[%c0_189, %c1_190, %c2_191, %c0_192] : memref<2x4x16x80xf32, #tpu.memory_space<vmem>>, vector<2x1x8x64xf32>
    %376 = vector.shape_cast %375 : vector<2x1x8x64xf32> to vector<2x8x64xf32>
    %377 = vector.extract_strided_slice %28 {offsets = [4, 1, 0], sizes = [1, 1, 64], strides = [1, 1, 1]} : vector<5x5x64xf32> to vector<1x1x64xf32>
    %378 = vector.shape_cast %377 : vector<1x1x64xf32> to vector<1x64xf32>
    %379 = vector.shape_cast %378 : vector<1x64xf32> to vector<1x1x64xf32>
    %380 = vector.broadcast %379 : vector<1x1x64xf32> to vector<2x8x64xf32>
    %381 = arith.mulf %376, %380 : vector<2x8x64xf32>
    %382 = arith.addf %366, %381 : vector<2x8x64xf32>
    %c0_193 = arith.constant 0 : index
    %c0_194 = arith.constant 0 : index
    %c2_195 = arith.constant 2 : index
    %c8_196 = arith.constant 8 : index
    %383 = vector.load %arg1[%c0_193, %c0_194, %c2_195, %c8_196] : memref<2x4x16x80xf32, #tpu.memory_space<vmem>>, vector<2x1x8x64xf32>
    %384 = vector.shape_cast %383 : vector<2x1x8x64xf32> to vector<2x8x64xf32>
    %385 = vector.extract_strided_slice %27 {offsets = [4, 2, 0], sizes = [1, 1, 64], strides = [1, 1, 1]} : vector<5x5x64xf32> to vector<1x1x64xf32>
    %386 = vector.shape_cast %385 : vector<1x1x64xf32> to vector<1x64xf32>
    %387 = vector.shape_cast %386 : vector<1x64xf32> to vector<1x1x64xf32>
    %388 = vector.broadcast %387 : vector<1x1x64xf32> to vector<2x8x64xf32>
    %389 = arith.mulf %384, %388 : vector<2x8x64xf32>
    %390 = arith.addf %374, %389 : vector<2x8x64xf32>
    %c0_197 = arith.constant 0 : index
    %c0_198 = arith.constant 0 : index
    %c2_199 = arith.constant 2 : index
    %c8_200 = arith.constant 8 : index
    %391 = vector.load %arg12[%c0_197, %c0_198, %c2_199, %c8_200] : memref<2x4x16x80xf32, #tpu.memory_space<vmem>>, vector<2x1x8x64xf32>
    %392 = vector.shape_cast %391 : vector<2x1x8x64xf32> to vector<2x8x64xf32>
    %393 = vector.extract_strided_slice %28 {offsets = [4, 2, 0], sizes = [1, 1, 64], strides = [1, 1, 1]} : vector<5x5x64xf32> to vector<1x1x64xf32>
    %394 = vector.shape_cast %393 : vector<1x1x64xf32> to vector<1x64xf32>
    %395 = vector.shape_cast %394 : vector<1x64xf32> to vector<1x1x64xf32>
    %396 = vector.broadcast %395 : vector<1x1x64xf32> to vector<2x8x64xf32>
    %397 = arith.mulf %392, %396 : vector<2x8x64xf32>
    %398 = arith.addf %382, %397 : vector<2x8x64xf32>
    %c0_201 = arith.constant 0 : index
    %c1_202 = arith.constant 1 : index
    %c2_203 = arith.constant 2 : index
    %c8_204 = arith.constant 8 : index
    %399 = vector.load %arg1[%c0_201, %c1_202, %c2_203, %c8_204] : memref<2x4x16x80xf32, #tpu.memory_space<vmem>>, vector<2x1x8x64xf32>
    %400 = vector.shape_cast %399 : vector<2x1x8x64xf32> to vector<2x8x64xf32>
    %401 = vector.extract_strided_slice %27 {offsets = [4, 3, 0], sizes = [1, 1, 64], strides = [1, 1, 1]} : vector<5x5x64xf32> to vector<1x1x64xf32>
    %402 = vector.shape_cast %401 : vector<1x1x64xf32> to vector<1x64xf32>
    %403 = vector.shape_cast %402 : vector<1x64xf32> to vector<1x1x64xf32>
    %404 = vector.broadcast %403 : vector<1x1x64xf32> to vector<2x8x64xf32>
    %405 = arith.mulf %400, %404 : vector<2x8x64xf32>
    %406 = arith.addf %390, %405 : vector<2x8x64xf32>
    %c0_205 = arith.constant 0 : index
    %c1_206 = arith.constant 1 : index
    %c2_207 = arith.constant 2 : index
    %c8_208 = arith.constant 8 : index
    %407 = vector.load %arg12[%c0_205, %c1_206, %c2_207, %c8_208] : memref<2x4x16x80xf32, #tpu.memory_space<vmem>>, vector<2x1x8x64xf32>
    %408 = vector.shape_cast %407 : vector<2x1x8x64xf32> to vector<2x8x64xf32>
    %409 = vector.extract_strided_slice %28 {offsets = [4, 3, 0], sizes = [1, 1, 64], strides = [1, 1, 1]} : vector<5x5x64xf32> to vector<1x1x64xf32>
    %410 = vector.shape_cast %409 : vector<1x1x64xf32> to vector<1x64xf32>
    %411 = vector.shape_cast %410 : vector<1x64xf32> to vector<1x1x64xf32>
    %412 = vector.broadcast %411 : vector<1x1x64xf32> to vector<2x8x64xf32>
    %413 = arith.mulf %408, %412 : vector<2x8x64xf32>
    %414 = arith.addf %398, %413 : vector<2x8x64xf32>
    %c0_209 = arith.constant 0 : index
    %c0_210 = arith.constant 0 : index
    %c2_211 = arith.constant 2 : index
    %c16_212 = arith.constant 16 : index
    %415 = vector.load %arg1[%c0_209, %c0_210, %c2_211, %c16_212] : memref<2x4x16x80xf32, #tpu.memory_space<vmem>>, vector<2x1x8x64xf32>
    %416 = vector.shape_cast %415 : vector<2x1x8x64xf32> to vector<2x8x64xf32>
    %417 = vector.extract_strided_slice %27 {offsets = [4, 4, 0], sizes = [1, 1, 64], strides = [1, 1, 1]} : vector<5x5x64xf32> to vector<1x1x64xf32>
    %418 = vector.shape_cast %417 : vector<1x1x64xf32> to vector<1x64xf32>
    %419 = vector.shape_cast %418 : vector<1x64xf32> to vector<1x1x64xf32>
    %420 = vector.broadcast %419 : vector<1x1x64xf32> to vector<2x8x64xf32>
    %421 = arith.mulf %416, %420 : vector<2x8x64xf32>
    %422 = arith.addf %406, %421 : vector<2x8x64xf32>
    %c0_213 = arith.constant 0 : index
    %c0_214 = arith.constant 0 : index
    %c2_215 = arith.constant 2 : index
    %c16_216 = arith.constant 16 : index
    %423 = vector.load %arg12[%c0_213, %c0_214, %c2_215, %c16_216] : memref<2x4x16x80xf32, #tpu.memory_space<vmem>>, vector<2x1x8x64xf32>
    %424 = vector.shape_cast %423 : vector<2x1x8x64xf32> to vector<2x8x64xf32>
    %425 = vector.extract_strided_slice %28 {offsets = [4, 4, 0], sizes = [1, 1, 64], strides = [1, 1, 1]} : vector<5x5x64xf32> to vector<1x1x64xf32>
    %426 = vector.shape_cast %425 : vector<1x1x64xf32> to vector<1x64xf32>
    %427 = vector.shape_cast %426 : vector<1x64xf32> to vector<1x1x64xf32>
    %428 = vector.broadcast %427 : vector<1x1x64xf32> to vector<2x8x64xf32>
    %429 = arith.mulf %424, %428 : vector<2x8x64xf32>
    %430 = arith.addf %414, %429 : vector<2x8x64xf32>
    %c0_217 = arith.constant 0 : index
    %c0_218 = arith.constant 0 : index
    %431 = vector.load %arg3[%c0_217, %c0_218] : memref<1x64xf32, #tpu.memory_space<vmem>>, vector<1x64xf32>
    %432 = vector.shape_cast %431 : vector<1x64xf32> to vector<1x1x64xf32>
    %433 = vector.broadcast %432 : vector<1x1x64xf32> to vector<2x8x64xf32>
    %434 = arith.addf %422, %433 : vector<2x8x64xf32>
    %435 = vector.shape_cast %434 : vector<2x8x64xf32> to vector<16x64xf32>
    %436 = arith.truncf %435 : vector<16x64xf32> to vector<16x64xbf16>
    %c0_219 = arith.constant 0 : index
    %c0_220 = arith.constant 0 : index
    %437 = vector.load %arg7[%c0_219, %c0_220] : memref<1x64xf32, #tpu.memory_space<vmem>>, vector<1x64xf32>
    %438 = vector.shape_cast %437 : vector<1x64xf32> to vector<1x1x64xf32>
    %439 = vector.broadcast %438 : vector<1x1x64xf32> to vector<2x8x64xf32>
    %440 = arith.addf %430, %439 : vector<2x8x64xf32>
    %441 = vector.shape_cast %440 : vector<2x8x64xf32> to vector<16x64xf32>
    %442 = arith.truncf %441 : vector<16x64xf32> to vector<16x64xbf16>
    %c0_221 = arith.constant 0 : index
    %c0_222 = arith.constant 0 : index
    %443 = vector.load %arg8[%c0_221, %c0_222] : memref<64x128xbf16, #tpu.memory_space<vmem>>, vector<64x128xbf16>
    %cst_223 = arith.constant dense<0.000000e+00> : vector<16x128xf32>
    %444 = tpu.matmul %436, %443, %cst_223 {dimension_numbers = #tpu.dot_dimension_numbers<[1], [0], [0], [1], [0, 0, 1, 1], [], []>} : vector<16x64xbf16>, vector<64x128xbf16>, vector<16x128xf32> -> vector<16x128xf32>
    %c0_224 = arith.constant 0 : index
    %c0_225 = arith.constant 0 : index
    %445 = vector.load %arg9[%c0_224, %c0_225] : memref<64x128xbf16, #tpu.memory_space<vmem>>, vector<64x128xbf16>
    %cst_226 = arith.constant dense<0.000000e+00> : vector<16x128xf32>
    %446 = tpu.matmul %442, %445, %cst_226 {dimension_numbers = #tpu.dot_dimension_numbers<[1], [0], [0], [1], [0, 0, 1, 1], [], []>} : vector<16x64xbf16>, vector<64x128xbf16>, vector<16x128xf32> -> vector<16x128xf32>
    %447 = arith.addf %444, %446 : vector<16x128xf32>
    %c0_227 = arith.constant 0 : index
    %c0_228 = arith.constant 0 : index
    %448 = vector.load %arg10[%c0_227, %c0_228] : memref<1x128xf32, #tpu.memory_space<vmem>>, vector<1x128xf32>
    %449 = vector.broadcast %448 : vector<1x128xf32> to vector<16x128xf32>
    %450 = arith.addf %447, %449 : vector<16x128xf32>
    %cst_229 = arith.constant 0.000000e+00 : f32
    %451 = vector.broadcast %cst_229 : f32 to vector<16x128xf32>
    %452 = arith.maximumf %450, %451 : vector<16x128xf32>
    %453 = vector.shape_cast %452 : vector<16x128xf32> to vector<2x8x128xf32>
    %c0_230 = arith.constant 0 : index
    %c0_231 = arith.constant 0 : index
    %c0_232 = arith.constant 0 : index
    %454 = vector.load %arg11[%c0_230, %c0_231, %c0_232] : memref<2x8x128xf32, #tpu.memory_space<vmem>>, vector<2x8x128xf32>
    tpu.vector_store %arg11[%c0_230, %c0_231, %c0_232], %453 {strides = array<i32>} : memref<2x8x128xf32, #tpu.memory_space<vmem>>, vector<2x8x128xf32>,
    return
  }
  func.func @transform_0(%arg0: i32) -> (i32, i32, i32, i32) {
    %c0_i32 = arith.constant 0 : i32
    %c0_i32_0 = arith.constant 0 : i32
    %c0_i32_1 = arith.constant 0 : i32
    %c0_i32_2 = arith.constant 0 : i32
    return %arg0, %c0_i32, %c0_i32_0, %c0_i32_1 : i32, i32, i32, i32
  }
  func.func @transform_1(%arg0: i32) -> (i32, i32, i32) {
    %c0_i32 = arith.constant 0 : i32
    %c0_i32_0 = arith.constant 0 : i32
    %c0_i32_1 = arith.constant 0 : i32
    %c0_i32_2 = arith.constant 0 : i32
    return %c0_i32, %c0_i32_0, %c0_i32_1 : i32, i32, i32
  }
  func.func @transform_2(%arg0: i32) -> (i32, i32) {
    %c0_i32 = arith.constant 0 : i32
    %c0_i32_0 = arith.constant 0 : i32
    %c0_i32_1 = arith.constant 0 : i32
    return %c0_i32, %c0_i32_0 : i32, i32
  }
  func.func @transform_3(%arg0: i32) -> (i32, i32) {
    %c0_i32 = arith.constant 0 : i32
    %c0_i32_0 = arith.constant 0 : i32
    %c0_i32_1 = arith.constant 0 : i32
    return %c0_i32, %c0_i32_0 : i32, i32
  }
  func.func @transform_4(%arg0: i32) -> (i32, i32) {
    %c0_i32 = arith.constant 0 : i32
    %c0_i32_0 = arith.constant 0 : i32
    %c0_i32_1 = arith.constant 0 : i32
    return %c0_i32, %c0_i32_0 : i32, i32
  }
  func.func @transform_5(%arg0: i32) -> (i32, i32, i32) {
    %c0_i32 = arith.constant 0 : i32
    %c0_i32_0 = arith.constant 0 : i32
    %c0_i32_1 = arith.constant 0 : i32
    %c0_i32_2 = arith.constant 0 : i32
    return %c0_i32, %c0_i32_0, %c0_i32_1 : i32, i32, i32
  }
  func.func @transform_6(%arg0: i32) -> (i32, i32) {
    %c0_i32 = arith.constant 0 : i32
    %c0_i32_0 = arith.constant 0 : i32
    %c0_i32_1 = arith.constant 0 : i32
    return %c0_i32, %c0_i32_0 : i32, i32
  }
  func.func @transform_7(%arg0: i32) -> (i32, i32) {
    %c0_i32 = arith.constant 0 : i32
    %c0_i32_0 = arith.constant 0 : i32
    %c0_i32_1 = arith.constant 0 : i32
    return %c0_i32, %c0_i32_0 : i32, i32
  }
  func.func @transform_8(%arg0: i32) -> (i32, i32) {
    %c0_i32 = arith.constant 0 : i32
    %c0_i32_0 = arith.constant 0 : i32
    %c0_i32_1 = arith.constant 0 : i32
    return %c0_i32, %c0_i32_0 : i32, i32
  }
  func.func @transform_9(%arg0: i32) -> (i32, i32) {
    %c0_i32 = arith.constant 0 : i32
    %c0_i32_0 = arith.constant 0 : i32
    %c0_i32_1 = arith.constant 0 : i32
    return %c0_i32, %c0_i32_0 : i32, i32
  }
  func.func @transform_10(%arg0: i32) -> (i32, i32, i32) {
    %c0_i32 = arith.constant 0 : i32
    %c0_i32_0 = arith.constant 0 : i32
    %c0_i32_1 = arith.constant 0 : i32
    return %arg0, %c0_i32, %c0_i32_0 : i32, i32, i32
  }
}

</mosaic_0001>

<llo_original>
// kernel: tile.31
$region0: #{tile.31}
  %s0 = inlined_call_operand.vmem [shape: f32[5,5,8,8], index: 0, kind: input, shape index: {}]
  %s1 = inlined_call_operand.vmem [shape: f32[5,5,64], index: 1, kind: output, shape index: {}]
  %v2 = vld [vmem:[%s0] ss:$8 sm:$0xf]
  %v3 = vld [vmem:[%s0] ss:$8 sm:$0xf0]
  %vm4 = vcmask 1047556
  %v5 = vsel %vm4, %v3, %v2
  %vm6 = vcmask 64512
  %7 = vst.msk [vmem:[%s1] sm:$0x1f] %vm6, %v5
  %s8 = scalar_lea.vmem %s1, 3
  %9 = vst.msk [vmem:[%s8] sm:$0xe0] %vm6, %v5
  %s10 = scalar_lea.vmem %s0, 64
  %v11 = vld [vmem:[%s10] ss:$8 sm:$0xf]
  %s12 = scalar_lea.vmem %s0, 64
  %v13 = vld [vmem:[%s12] ss:$8 sm:$0xf0]
  %vm14 = vcmask 1047556
  %v15 = vsel %vm14, %v13, %v11
  %vm16 = vcmask 64512
  %s17 = scalar_lea.vmem %s1, 11
  %18 = vst.msk [vmem:[%s17] sm:$0x3] %vm16, %v15
  %s19 = scalar_lea.vmem %s1, 14
  %20 = vst.msk [vmem:[%s19] sm:$0x7c] %vm16, %v15
  %s21 = scalar_lea.vmem %s1, 17
  %22 = vst.msk [vmem:[%s21] sm:$0x80] %vm16, %v15
  %s23 = scalar_lea.vmem %s0, 128
  %v24 = vld [vmem:[%s23] ss:$8 sm:$0xf]
  %s25 = scalar_lea.vmem %s0, 128
  %v26 = vld [vmem:[%s25] ss:$8 sm:$0xf0]
  %vm27 = vcmask 1047556
  %v28 = vsel %vm27, %v26, %v24
  %vm29 = vcmask 64512
  %s30 = scalar_lea.vmem %s1, 25
  %31 = vst.msk [vmem:[%s30] sm:$0xf] %vm29, %v28
  %s32 = scalar_lea.vmem %s1, 28
  %33 = vst.msk [vmem:[%s32] sm:$0xf0] %vm29, %v28
  %s34 = scalar_lea.vmem %s0, 192
  %v35 = vld [vmem:[%s34] sm:$0x1]
  %vm36 = vcmask 64512
  %s37 = scalar_lea.vmem %s1, 36
  %38 = vst.msk [vmem:[%s37] sm:$0x1] %vm36, %v35
  %s39 = scalar_lea.vmem %s0, 7
  %v40 = vld [vmem:[%s39] ss:$8 sm:$0xf]
  %s41 = scalar_lea.vmem %s0, 7
  %v42 = vld [vmem:[%s41] ss:$8 sm:$0xf0]
  %vm43 = vcmask 1047556
  %v44 = vsel %vm43, %v42, %v40
  %45 = vrot.lane.b32.xlu0 %v44, 56
  %v46 = vpop.permute.xlu0 %45
  %vm47 = vcmask 523712
  %48 = vst.msk [vmem:[%s1] sm:$0x1f] %vm47, %v46
  %s49 = scalar_lea.vmem %s1, 3
  %50 = vst.msk [vmem:[%s49] sm:$0xe0] %vm47, %v46
  %s51 = scalar_lea.vmem %s0, 167
  %v52 = vld [vmem:[%s51] ss:$8 sm:$0xf]
  %s53 = scalar_lea.vmem %s0, 195
  %v54 = vld [vmem:[%s53] sm:$0x10]
  %vm55 = vcmask 1044484
  %v56 = vsel %vm55, %v54, %v52
  %s57 = scalar_lea.vmem %s0, 31
  %v58 = vld [vmem:[%s57] ss:$8 sm:$0xe0]
  %vm59 = vcmask 1047557
  %v60 = vsel %vm59, %v58, %v56
  %61 = vrot.lane.b32.xlu0 %v60, 56
  %v62 = vpop.permute.xlu0 %61
  %vm63 = vcmask 523712
  %s64 = scalar_lea.vmem %s1, 32
  %65 = vst.msk [vmem:[%s64] sm:$0x1f] %vm63, %v62
  %s66 = scalar_lea.vmem %s1, 6
  %67 = vst.msk [vmem:[%s66] sm:$0x60] %vm63, %v62
  %s68 = scalar_lea.vmem %s1, 9
  %69 = vst.msk [vmem:[%s68] sm:$0x80] %vm63, %v62
  %s70 = scalar_lea.vmem %s0, 95
  %v71 = vld [vmem:[%s70] ss:$8 sm:$0xf]
  %s72 = scalar_lea.vmem %s0, 95
  %v73 = vld [vmem:[%s72] ss:$8 sm:$0xf0]
  %vm74 = vcmask 1047556
  %v75 = vsel %vm74, %v73, %v71
  %76 = vrot.lane.b32.xlu0 %v75, 56
  %v77 = vpop.permute.xlu0 %76
  %vm78 = vcmask 523712
  %s79 = scalar_lea.vmem %s1, 17
  %80 = vst.msk [vmem:[%s79] sm:$0xf] %vm78, %v77
  %s81 = scalar_lea.vmem %s1, 20
  %82 = vst.msk [vmem:[%s81] sm:$0xf0] %vm78, %v77
  %s83 = scalar_lea.vmem %s0, 159
  %v84 = vld [vmem:[%s83] sm:$0x1]
  %85 = vrot.lane.b32.xlu0 %v84, 56
  %v86 = vpop.permute.xlu0 %85
  %vm87 = vcmask 523712
  %s88 = scalar_lea.vmem %s1, 28
  %89 = vst.msk [vmem:[%s88] sm:$0x1] %vm87, %v86
  %s90 = scalar_lea.vmem %s0, 6
  %v91 = vld [vmem:[%s90] ss:$8 sm:$0xf]
  %s92 = scalar_lea.vmem %s0, 6
  %v93 = vld [vmem:[%s92] ss:$8 sm:$0xf0]
  %vm94 = vcmask 1047556
  %v95 = vsel %vm94, %v93, %v91
  %96 = vrot.lane.b32.xlu0 %v95, 48
  %v97 = vpop.permute.xlu0 %96
  %vm98 = vcmask 458112
  %99 = vst.msk [vmem:[%s1] sm:$0x1f] %vm98, %v97
  %s100 = scalar_lea.vmem %s1, 3
  %101 = vst.msk [vmem:[%s100] sm:$0xe0] %vm98, %v97
  %s102 = scalar_lea.vmem %s0, 166
  %v103 = vld [vmem:[%s102] ss:$8 sm:$0xf]
  %s104 = scalar_lea.vmem %s0, 194
  %v105 = vld [vmem:[%s104] sm:$0x10]
  %vm106 = vcmask 1044484
  %v107 = vsel %vm106, %v105, %v103
  %s108 = scalar_lea.vmem %s0, 30
  %v109 = vld [vmem:[%s108] ss:$8 sm:$0xe0]
  %vm110 = vcmask 1047557
  %v111 = vsel %vm110, %v109, %v107
  %112 = vrot.lane.b32.xlu0 %v111, 48
  %v113 = vpop.permute.xlu0 %112
  %vm114 = vcmask 458112
  %s115 = scalar_lea.vmem %s1, 32
  %116 = vst.msk [vmem:[%s115] sm:$0x1f] %vm114, %v113
  %s117 = scalar_lea.vmem %s1, 6
  %118 = vst.msk [vmem:[%s117] sm:$0x60] %vm114, %v113
  %s119 = scalar_lea.vmem %s1, 9
  %120 = vst.msk [vmem:[%s119] sm:$0x80] %vm114, %v113
  %s121 = scalar_lea.vmem %s0, 94
  %v122 = vld [vmem:[%s121] ss:$8 sm:$0xf]
  %s123 = scalar_lea.vmem %s0, 94
  %v124 = vld [vmem:[%s123] ss:$8 sm:$0xf0]
  %vm125 = vcmask 1047556
  %v126 = vsel %vm125, %v124, %v122
  %127 = vrot.lane.b32.xlu0 %v126, 48
  %v128 = vpop.permute.xlu0 %127
  %vm129 = vcmask 458112
  %s130 = scalar_lea.vmem %s1, 17
  %131 = vst.msk [vmem:[%s130] sm:$0xf] %vm129, %v128
  %s132 = scalar_lea.vmem %s1, 20
  %133 = vst.msk [vmem:[%s132] sm:$0xf0] %vm129, %v128
  %s134 = scalar_lea.vmem %s0, 158
  %v135 = vld [vmem:[%s134] sm:$0x1]
  %136 = vrot.lane.b32.xlu0 %v135, 48
  %v137 = vpop.permute.xlu0 %136
  %vm138 = vcmask 458112
  %s139 = scalar_lea.vmem %s1, 28
  %140 = vst.msk [vmem:[%s139] sm:$0x1] %vm138, %v137
  %s141 = scalar_lea.vmem %s0, 5
  %v142 = vld [vmem:[%s141] ss:$8 sm:$0xf]
  %s143 = scalar_lea.vmem %s0, 5
  %v144 = vld [vmem:[%s143] ss:$8 sm:$0xf0]
  %vm145 = vcmask 1047556
  %v146 = vsel %vm145, %v144, %v142
  %147 = vrot.lane.b32.xlu0 %v146, 40
  %v148 = vpop.permute.xlu0 %147
  %vm149 = vcmask 392512
  %150 = vst.msk [vmem:[%s1] sm:$0x1f] %vm149, %v148
  %s151 = scalar_lea.vmem %s1, 3
  %152 = vst.msk [vmem:[%s151] sm:$0xe0] %vm149, %v148
  %s153 = scalar_lea.vmem %s0, 165
  %v154 = vld [vmem:[%s153] ss:$8 sm:$0xf]
  %s155 = scalar_lea.vmem %s0, 193
  %v156 = vld [vmem:[%s155] sm:$0x10]
  %vm157 = vcmask 1044484
  %v158 = vsel %vm157, %v156, %v154
  %s159 = scalar_lea.vmem %s0, 29
  %v160 = vld [vmem:[%s159] ss:$8 sm:$0xe0]
  %vm161 = vcmask 1047557
  %v162 = vsel %vm161, %v160, %v158
  %163 = vrot.lane.b32.xlu0 %v162, 40
  %v164 = vpop.permute.xlu0 %163
  %vm165 = vcmask 392512
  %s166 = scalar_lea.vmem %s1, 32
  %167 = vst.msk [vmem:[%s166] sm:$0x1f] %vm165, %v164
  %s168 = scalar_lea.vmem %s1, 6
  %169 = vst.msk [vmem:[%s168] sm:$0x60] %vm165, %v164
  %s170 = scalar_lea.vmem %s1, 9
  %171 = vst.msk [vmem:[%s170] sm:$0x80] %vm165, %v164
  %s172 = scalar_lea.vmem %s0, 93
  %v173 = vld [vmem:[%s172] ss:$8 sm:$0xf]
  %s174 = scalar_lea.vmem %s0, 93
  %v175 = vld [vmem:[%s174] ss:$8 sm:$0xf0]
  %vm176 = vcmask 1047556
  %v177 = vsel %vm176, %v175, %v173
  %178 = vrot.lane.b32.xlu0 %v177, 40
  %v179 = vpop.permute.xlu0 %178
  %vm180 = vcmask 392512
  %s181 = scalar_lea.vmem %s1, 17
  %182 = vst.msk [vmem:[%s181] sm:$0xf] %vm180, %v179
  %s183 = scalar_lea.vmem %s1, 20
  %184 = vst.msk [vmem:[%s183] sm:$0xf0] %vm180, %v179
  %s185 = scalar_lea.vmem %s0, 157
  %v186 = vld [vmem:[%s185] sm:$0x1]
  %187 = vrot.lane.b32.xlu0 %v186, 40
  %v188 = vpop.permute.xlu0 %187
  %vm189 = vcmask 392512
  %s190 = scalar_lea.vmem %s1, 28
  %191 = vst.msk [vmem:[%s190] sm:$0x1] %vm189, %v188
  %s192 = scalar_lea.vmem %s0, 4
  %v193 = vld [vmem:[%s192] ss:$8 sm:$0xf]
  %s194 = scalar_lea.vmem %s0, 4
  %v195 = vld [vmem:[%s194] ss:$8 sm:$0xf0]
  %vm196 = vcmask 1047556
  %v197 = vsel %vm196, %v195, %v193
  %198 = vrot.lane.b32.xlu0 %v197, 32
  %v199 = vpop.permute.xlu0 %198
  %vm200 = vcmask 326912
  %201 = vst.msk [vmem:[%s1] sm:$0x1f] %vm200, %v199
  %s202 = scalar_lea.vmem %s1, 3
  %203 = vst.msk [vmem:[%s202] sm:$0xe0] %vm200, %v199
  %s204 = scalar_lea.vmem %s0, 164
  %v205 = vld [vmem:[%s204] ss:$8 sm:$0xf]
  %s206 = scalar_lea.vmem %s0, 192
  %v207 = vld [vmem:[%s206] sm:$0x10]
  %vm208 = vcmask 1044484
  %v209 = vsel %vm208, %v207, %v205
  %s210 = scalar_lea.vmem %s0, 28
  %v211 = vld [vmem:[%s210] ss:$8 sm:$0xe0]
  %vm212 = vcmask 1047557
  %v213 = vsel %vm212, %v211, %v209
  %214 = vrot.lane.b32.xlu0 %v213, 32
  %v215 = vpop.permute.xlu0 %214
  %vm216 = vcmask 326912
  %s217 = scalar_lea.vmem %s1, 32
  %218 = vst.msk [vmem:[%s217] sm:$0x1f] %vm216, %v215
  %s219 = scalar_lea.vmem %s1, 6
  %220 = vst.msk [vmem:[%s219] sm:$0x60] %vm216, %v215
  %s221 = scalar_lea.vmem %s1, 9
  %222 = vst.msk [vmem:[%s221] sm:$0x80] %vm216, %v215
  %s223 = scalar_lea.vmem %s0, 92
  %v224 = vld [vmem:[%s223] ss:$8 sm:$0xf]
  %s225 = scalar_lea.vmem %s0, 92
  %v226 = vld [vmem:[%s225] ss:$8 sm:$0xf0]
  %vm227 = vcmask 1047556
  %v228 = vsel %vm227, %v226, %v224
  %229 = vrot.lane.b32.xlu0 %v228, 32
  %v230 = vpop.permute.xlu0 %229
  %vm231 = vcmask 326912
  %s232 = scalar_lea.vmem %s1, 17
  %233 = vst.msk [vmem:[%s232] sm:$0xf] %vm231, %v230
  %s234 = scalar_lea.vmem %s1, 20
  %235 = vst.msk [vmem:[%s234] sm:$0xf0] %vm231, %v230
  %s236 = scalar_lea.vmem %s0, 156
  %v237 = vld [vmem:[%s236] sm:$0x1]
  %238 = vrot.lane.b32.xlu0 %v237, 32
  %v239 = vpop.permute.xlu0 %238
  %vm240 = vcmask 326912
  %s241 = scalar_lea.vmem %s1, 28
  %242 = vst.msk [vmem:[%s241] sm:$0x1] %vm240, %v239
  %s243 = scalar_lea.vmem %s0, 3
  %v244 = vld [vmem:[%s243] ss:$8 sm:$0xf]
  %s245 = scalar_lea.vmem %s0, 3
  %v246 = vld [vmem:[%s245] ss:$8 sm:$0xf0]
  %vm247 = vcmask 1047556
  %v248 = vsel %vm247, %v246, %v244
  %249 = vrot.lane.b32.xlu0 %v248, 24
  %v250 = vpop.permute.xlu0 %249
  %vm251 = vcmask 261312
  %252 = vst.msk [vmem:[%s1] sm:$0x1f] %vm251, %v250
  %s253 = scalar_lea.vmem %s1, 3
  %254 = vst.msk [vmem:[%s253] sm:$0xe0] %vm251, %v250
  %s255 = scalar_lea.vmem %s0, 163
  %v256 = vld [vmem:[%s255] ss:$8 sm:$0xf]
  %s257 = scalar_lea.vmem %s0, 191
  %v258 = vld [vmem:[%s257] sm:$0x10]
  %vm259 = vcmask 1044484
  %v260 = vsel %vm259, %v258, %v256
  %s261 = scalar_lea.vmem %s0, 27
  %v262 = vld [vmem:[%s261] ss:$8 sm:$0xe0]
  %vm263 = vcmask 1047557
  %v264 = vsel %vm263, %v262, %v260
  %265 = vrot.lane.b32.xlu0 %v264, 24
  %v266 = vpop.permute.xlu0 %265
  %vm267 = vcmask 261312
  %s268 = scalar_lea.vmem %s1, 32
  %269 = vst.msk [vmem:[%s268] sm:$0x1f] %vm267, %v266
  %s270 = scalar_lea.vmem %s1, 6
  %271 = vst.msk [vmem:[%s270] sm:$0x60] %vm267, %v266
  %s272 = scalar_lea.vmem %s1, 9
  %273 = vst.msk [vmem:[%s272] sm:$0x80] %vm267, %v266
  %s274 = scalar_lea.vmem %s0, 91
  %v275 = vld [vmem:[%s274] ss:$8 sm:$0xf]
  %s276 = scalar_lea.vmem %s0, 91
  %v277 = vld [vmem:[%s276] ss:$8 sm:$0xf0]
  %vm278 = vcmask 1047556
  %v279 = vsel %vm278, %v277, %v275
  %280 = vrot.lane.b32.xlu0 %v279, 24
  %v281 = vpop.permute.xlu0 %280
  %vm282 = vcmask 261312
  %s283 = scalar_lea.vmem %s1, 17
  %284 = vst.msk [vmem:[%s283] sm:$0xf] %vm282, %v281
  %s285 = scalar_lea.vmem %s1, 20
  %286 = vst.msk [vmem:[%s285] sm:$0xf0] %vm282, %v281
  %s287 = scalar_lea.vmem %s0, 155
  %v288 = vld [vmem:[%s287] sm:$0x1]
  %289 = vrot.lane.b32.xlu0 %v288, 24
  %v290 = vpop.permute.xlu0 %289
  %vm291 = vcmask 261312
  %s292 = scalar_lea.vmem %s1, 28
  %293 = vst.msk [vmem:[%s292] sm:$0x1] %vm291, %v290
  %s294 = scalar_lea.vmem %s0, 2
  %v295 = vld [vmem:[%s294] ss:$8 sm:$0xf]
  %s296 = scalar_lea.vmem %s0, 2
  %v297 = vld [vmem:[%s296] ss:$8 sm:$0xf0]
  %vm298 = vcmask 1047556
  %v299 = vsel %vm298, %v297, %v295
  %300 = vrot.lane.b32.xlu0 %v299, 16
  %v301 = vpop.permute.xlu0 %300
  %vm302 = vcmask 195712
  %303 = vst.msk [vmem:[%s1] sm:$0x1f] %vm302, %v301
  %s304 = scalar_lea.vmem %s1, 3
  %305 = vst.msk [vmem:[%s304] sm:$0xe0] %vm302, %v301
  %s306 = scalar_lea.vmem %s0, 162
  %v307 = vld [vmem:[%s306] ss:$8 sm:$0xf]
  %s308 = scalar_lea.vmem %s0, 190
  %v309 = vld [vmem:[%s308] sm:$0x10]
  %vm310 = vcmask 1044484
  %v311 = vsel %vm310, %v309, %v307
  %s312 = scalar_lea.vmem %s0, 26
  %v313 = vld [vmem:[%s312] ss:$8 sm:$0xe0]
  %vm314 = vcmask 1047557
  %v315 = vsel %vm314, %v313, %v311
  %316 = vrot.lane.b32.xlu0 %v315, 16
  %v317 = vpop.permute.xlu0 %316
  %vm318 = vcmask 195712
  %s319 = scalar_lea.vmem %s1, 32
  %320 = vst.msk [vmem:[%s319] sm:$0x1f] %vm318, %v317
  %s321 = scalar_lea.vmem %s1, 6
  %322 = vst.msk [vmem:[%s321] sm:$0x60] %vm318, %v317
  %s323 = scalar_lea.vmem %s1, 9
  %324 = vst.msk [vmem:[%s323] sm:$0x80] %vm318, %v317
  %s325 = scalar_lea.vmem %s0, 90
  %v326 = vld [vmem:[%s325] ss:$8 sm:$0xf]
  %s327 = scalar_lea.vmem %s0, 90
  %v328 = vld [vmem:[%s327] ss:$8 sm:$0xf0]
  %vm329 = vcmask 1047556
  %v330 = vsel %vm329, %v328, %v326
  %331 = vrot.lane.b32.xlu0 %v330, 16
  %v332 = vpop.permute.xlu0 %331
  %vm333 = vcmask 195712
  %s334 = scalar_lea.vmem %s1, 17
  %335 = vst.msk [vmem:[%s334] sm:$0xf] %vm333, %v332
  %s336 = scalar_lea.vmem %s1, 20
  %337 = vst.msk [vmem:[%s336] sm:$0xf0] %vm333, %v332
  %s338 = scalar_lea.vmem %s0, 154
  %v339 = vld [vmem:[%s338] sm:$0x1]
  %340 = vrot.lane.b32.xlu0 %v339, 16
  %v341 = vpop.permute.xlu0 %340
  %vm342 = vcmask 195712
  %s343 = scalar_lea.vmem %s1, 28
  %344 = vst.msk [vmem:[%s343] sm:$0x1] %vm342, %v341
  %s345 = scalar_lea.vmem %s0, 1
  %v346 = vld [vmem:[%s345] ss:$8 sm:$0xf]
  %s347 = scalar_lea.vmem %s0, 1
  %v348 = vld [vmem:[%s347] ss:$8 sm:$0xf0]
  %vm349 = vcmask 1047556
  %v350 = vsel %vm349, %v348, %v346
  %351 = vrot.lane.b32.xlu0 %v350, 8
  %v352 = vpop.permute.xlu0 %351
  %vm353 = vcmask 130112
  %354 = vst.msk [vmem:[%s1] sm:$0x1f] %vm353, %v352
  %s355 = scalar_lea.vmem %s1, 3
  %356 = vst.msk [vmem:[%s355] sm:$0xe0] %vm353, %v352
  %s357 = scalar_lea.vmem %s0, 161
  %v358 = vld [vmem:[%s357] ss:$8 sm:$0xf]
  %s359 = scalar_lea.vmem %s0, 189
  %v360 = vld [vmem:[%s359] sm:$0x10]
  %vm361 = vcmask 1044484
  %v362 = vsel %vm361, %v360, %v358
  %s363 = scalar_lea.vmem %s0, 25
  %v364 = vld [vmem:[%s363] ss:$8 sm:$0xe0]
  %vm365 = vcmask 1047557
  %v366 = vsel %vm365, %v364, %v362
  %367 = vrot.lane.b32.xlu0 %v366, 8
  %v368 = vpop.permute.xlu0 %367
  %vm369 = vcmask 130112
  %s370 = scalar_lea.vmem %s1, 32
  %371 = vst.msk [vmem:[%s370] sm:$0x1f] %vm369, %v368
  %s372 = scalar_lea.vmem %s1, 6
  %373 = vst.msk [vmem:[%s372] sm:$0x60] %vm369, %v368
  %s374 = scalar_lea.vmem %s1, 9
  %375 = vst.msk [vmem:[%s374] sm:$0x80] %vm369, %v368
  %s376 = scalar_lea.vmem %s0, 89
  %v377 = vld [vmem:[%s376] ss:$8 sm:$0xf]
  %s378 = scalar_lea.vmem %s0, 89
  %v379 = vld [vmem:[%s378] ss:$8 sm:$0xf0]
  %vm380 = vcmask 1047556
  %v381 = vsel %vm380, %v379, %v377
  %382 = vrot.lane.b32.xlu0 %v381, 8
  %v383 = vpop.permute.xlu0 %382
  %vm384 = vcmask 130112
  %s385 = scalar_lea.vmem %s1, 17
  %386 = vst.msk [vmem:[%s385] sm:$0xf] %vm384, %v383
  %s387 = scalar_lea.vmem %s1, 20
  %388 = vst.msk [vmem:[%s387] sm:$0xf0] %vm384, %v383
  %s389 = scalar_lea.vmem %s0, 153
  %v390 = vld [vmem:[%s389] sm:$0x1]
  %391 = vrot.lane.b32.xlu0 %v390, 8
  %v392 = vpop.permute.xlu0 %391
  %vm393 = vcmask 130112
  %s394 = scalar_lea.vmem %s1, 28
  %395 = vst.msk [vmem:[%s394] sm:$0x1] %vm393, %v392

// kernel: tile.39
$region0: #{tile.39}
  #allocation0 [shape = 's32[1]{0}', space=sflag, size = 0x4, scoped, tag = 'scoped memory for tile.39']
  %s0 = inlined_call_operand.vmem [shape: f32[8], index: 0, kind: input, shape index: {}]
  %s1 = inlined_call_operand.vmem [shape: f32[8,8], index: 1, kind: output, shape index: {}]
  // Predicated region
  $region2: #{tile.39} parent=0 // pred_check
    _
  $region3: #{tile.39} parent=0 // pred_check_branch
    %3 = sbr.rel (0) target = $region5
  $region4: #{tile.39} parent=0 // pred_region
    _
  $region5: #{tile.39} parent=0 // pred_fallthru
    _
  %v4 = vld [vmem:[%s0] ss:$0 sm:$0xff]
  %5 = vst [vmem:[%s1] sm:$0xff] %v4

// kernel: tile.40
$region0: #{tile.40}
  %s0 = inlined_call_operand.vmem [shape: f32[8,8], index: 0, kind: input, shape index: {}]
  %s1 = inlined_call_operand.vmem [shape: f32[1,64], index: 1, kind: output, shape index: {}]
  $region1: #{tile.40} parent=0
    #allocation0 [shape = 'u8[4096]{0}', space=vmem, size = 0x1000, scoped, tag = 'scoped mem for output reshape']
    %v2 = vld [vmem:[%s0] sm:$0x1]
    %vm3 = vcmask 64512
    %4 = vst.msk [vmem:[#allocation0] sm:$0x1] %vm3, %v2
    %s5 = scalar_lea.vmem %s0, 7
    %v6 = vld [vmem:[%s5] sm:$0x1]
    %7 = vrot.lane.b32.xlu0 %v6, 56
    %v8 = vpop.permute.xlu0 %7
    %vm9 = vcmask 523712
    %10 = vst.msk [vmem:[#allocation0] sm:$0x1] %vm9, %v8
    %s11 = scalar_lea.vmem %s0, 6
    %v12 = vld [vmem:[%s11] sm:$0x1]
    %13 = vrot.lane.b32.xlu0 %v12, 48
    %v14 = vpop.permute.xlu0 %13
    %vm15 = vcmask 458112
    %16 = vst.msk [vmem:[#allocation0] sm:$0x1] %vm15, %v14
    %s17 = scalar_lea.vmem %s0, 5
    %v18 = vld [vmem:[%s17] sm:$0x1]
    %19 = vrot.lane.b32.xlu0 %v18, 40
    %v20 = vpop.permute.xlu0 %19
    %vm21 = vcmask 392512
    %22 = vst.msk [vmem:[#allocation0] sm:$0x1] %vm21, %v20
    %s23 = scalar_lea.vmem %s0, 4
    %v24 = vld [vmem:[%s23] sm:$0x1]
    %25 = vrot.lane.b32.xlu0 %v24, 32
    %v26 = vpop.permute.xlu0 %25
    %vm27 = vcmask 326912
    %28 = vst.msk [vmem:[#allocation0] sm:$0x1] %vm27, %v26
    %s29 = scalar_lea.vmem %s0, 3
    %v30 = vld [vmem:[%s29] sm:$0x1]
    %31 = vrot.lane.b32.xlu0 %v30, 24
    %v32 = vpop.permute.xlu0 %31
    %vm33 = vcmask 261312
    %34 = vst.msk [vmem:[#allocation0] sm:$0x1] %vm33, %v32
    %s35 = scalar_lea.vmem %s0, 2
    %v36 = vld [vmem:[%s35] sm:$0x1]
    %37 = vrot.lane.b32.xlu0 %v36, 16
    %v38 = vpop.permute.xlu0 %37
    %vm39 = vcmask 195712
    %40 = vst.msk [vmem:[#allocation0] sm:$0x1] %vm39, %v38
    %s41 = scalar_lea.vmem %s0, 1
    %v42 = vld [vmem:[%s41] sm:$0x1]
    %43 = vrot.lane.b32.xlu0 %v42, 8
    %v44 = vpop.permute.xlu0 %43
    %vm45 = vcmask 130112
    %46 = vst.msk [vmem:[#allocation0] sm:$0x1] %vm45, %v44
    %s48 = sshll.u32 1, 1
    %s49 = ssub.s32 %s48, 1
    %v51 = vld [vmem:[#allocation0] sm:%s49]
    %s52 = sshll.u32 1, 1
    %s53 = ssub.s32 %s52, 1
    %54 = vst [vmem:[%s1] sm:%s53] %v51

// kernel: tile.47
$region0: #{tile.47}
  #allocation0 [shape = 's32[1]{0}', space=sflag, size = 0x4, scoped, tag = 'scoped memory for tile.47']
  %s0 = inlined_call_operand.vmem [shape: f32[8], index: 0, kind: input, shape index: {}]
  %s1 = inlined_call_operand.vmem [shape: f32[10,8], index: 1, kind: output, shape index: {}]
  // Predicated region
  $region2: #{tile.47} parent=0 // pred_check
    _
  $region3: #{tile.47} parent=0 // pred_check_branch
    %3 = sbr.rel (0) target = $region5
  $region4: #{tile.47} parent=0 // pred_region
    _
  $region5: #{tile.47} parent=0 // pred_fallthru
    _
  %v4 = vld [vmem:[%s0] ss:$0 sm:$0xff]
  %5 = vst [vmem:[%s1] sm:$0xff] %v4
  %s6 = scalar_lea.vmem %s1, 8
  %7 = vst [vmem:[%s6] sm:$0xff] %v4

// kernel: tile.48
$region0: #{tile.48}
  %s0 = inlined_call_operand.vmem [shape: f32[10,8], index: 0, kind: input, shape index: {}]
  %s1 = inlined_call_operand.vmem [shape: f32[1,80], index: 1, kind: output, shape index: {}]
  $region1: #{tile.48} parent=0
    #allocation0 [shape = 'u8[4096]{0}', space=vmem, size = 0x1000, scoped, tag = 'scoped mem for output reshape']
    %v2 = vld [vmem:[%s0] sm:$0x1]
    %vm3 = vcmask 64512
    %4 = vst.msk [vmem:[#allocation0] sm:$0x1] %vm3, %v2
    %s5 = scalar_lea.vmem %s0, 9
    %v6 = vld [vmem:[%s5] sm:$0x1]
    %7 = vrot.lane.b32.xlu0 %v6, 72
    %v8 = vpop.permute.xlu0 %7
    %vm9 = vcmask 654912
    %10 = vst.msk [vmem:[#allocation0] sm:$0x1] %vm9, %v8
    %s11 = scalar_lea.vmem %s0, 8
    %v12 = vld [vmem:[%s11] sm:$0x1]
    %13 = vrot.lane.b32.xlu0 %v12, 64
    %v14 = vpop.permute.xlu0 %13
    %vm15 = vcmask 589312
    %16 = vst.msk [vmem:[#allocation0] sm:$0x1] %vm15, %v14
    %s17 = scalar_lea.vmem %s0, 7
    %v18 = vld [vmem:[%s17] sm:$0x1]
    %19 = vrot.lane.b32.xlu0 %v18, 56
    %v20 = vpop.permute.xlu0 %19
    %vm21 = vcmask 523712
    %22 = vst.msk [vmem:[#allocation0] sm:$0x1] %vm21, %v20
    %s23 = scalar_lea.vmem %s0, 6
    %v24 = vld [vmem:[%s23] sm:$0x1]
    %25 = vrot.lane.b32.xlu0 %v24, 48
    %v26 = vpop.permute.xlu0 %25
    %vm27 = vcmask 458112
    %28 = vst.msk [vmem:[#allocation0] sm:$0x1] %vm27, %v26
    %s29 = scalar_lea.vmem %s0, 5
    %v30 = vld [vmem:[%s29] sm:$0x1]
    %31 = vrot.lane.b32.xlu0 %v30, 40
    %v32 = vpop.permute.xlu0 %31
    %vm33 = vcmask 392512
    %34 = vst.msk [vmem:[#allocation0] sm:$0x1] %vm33, %v32
    %s35 = scalar_lea.vmem %s0, 4
    %v36 = vld [vmem:[%s35] sm:$0x1]
    %37 = vrot.lane.b32.xlu0 %v36, 32
    %v38 = vpop.permute.xlu0 %37
    %vm39 = vcmask 326912
    %40 = vst.msk [vmem:[#allocation0] sm:$0x1] %vm39, %v38
    %s41 = scalar_lea.vmem %s0, 3
    %v42 = vld [vmem:[%s41] sm:$0x1]
    %43 = vrot.lane.b32.xlu0 %v42, 24
    %v44 = vpop.permute.xlu0 %43
    %vm45 = vcmask 261312
    %46 = vst.msk [vmem:[#allocation0] sm:$0x1] %vm45, %v44
    %s47 = scalar_lea.vmem %s0, 2
    %v48 = vld [vmem:[%s47] sm:$0x1]
    %49 = vrot.lane.b32.xlu0 %v48, 16
    %v50 = vpop.permute.xlu0 %49
    %vm51 = vcmask 195712
    %52 = vst.msk [vmem:[#allocation0] sm:$0x1] %vm51, %v50
    %s53 = scalar_lea.vmem %s0, 1
    %v54 = vld [vmem:[%s53] sm:$0x1]
    %55 = vrot.lane.b32.xlu0 %v54, 8
    %v56 = vpop.permute.xlu0 %55
    %vm57 = vcmask 130112
    %58 = vst.msk [vmem:[#allocation0] sm:$0x1] %vm57, %v56
    %s60 = sshll.u32 1, 1
    %s61 = ssub.s32 %s60, 1
    %v63 = vld [vmem:[#allocation0] sm:%s61]
    %s64 = sshll.u32 1, 1
    %s65 = ssub.s32 %s64, 1
    %66 = vst [vmem:[%s1] sm:%s65] %v63

// kernel: tile.52
$region0: #{tile.52}
  #allocation0 [shape = 's32[1]{0}', space=sflag, size = 0x4, scoped, tag = 'scoped memory for tile.52']
  %s0 = inlined_call_operand.vmem [shape: f32[16], index: 0, kind: input, shape index: {}]
  %s1 = inlined_call_operand.vmem [shape: f32[8,16], index: 1, kind: output, shape index: {}]
  // Predicated region
  $region2: #{tile.52} parent=0 // pred_check
    _
  $region3: #{tile.52} parent=0 // pred_check_branch
    %3 = sbr.rel (0) target = $region5
  $region4: #{tile.52} parent=0 // pred_region
    _
  $region5: #{tile.52} parent=0 // pred_fallthru
    _
  %v4 = vld [vmem:[%s0] ss:$0 sm:$0xff]
  %5 = vst [vmem:[%s1] sm:$0xff] %v4

// kernel: tile.53
$region0: #{tile.53}
  %s0 = inlined_call_operand.vmem [shape: f32[8,16], index: 0, kind: input, shape index: {}]
  %s1 = inlined_call_operand.vmem [shape: f32[1,128], index: 1, kind: output, shape index: {}]
  $region1: #{tile.53} parent=0
    #allocation0 [shape = 'u8[4096]{0}', space=vmem, size = 0x1000, scoped, tag = 'scoped mem for output reshape']
    %v2 = vld [vmem:[%s0] sm:$0x1]
    %vm3 = vcmask 130048
    %4 = vst.msk [vmem:[#allocation0] sm:$0x1] %vm3, %v2
    %s5 = scalar_lea.vmem %s0, 7
    %v6 = vld [vmem:[%s5] sm:$0x1]
    %7 = vrot.lane.b32.xlu0 %v6, 112
    %v8 = vpop.permute.xlu0 %7
    %vm9 = vcmask 1048448
    %10 = vst.msk [vmem:[#allocation0] sm:$0x1] %vm9, %v8
    %s11 = scalar_lea.vmem %s0, 6
    %v12 = vld [vmem:[%s11] sm:$0x1]
    %13 = vrot.lane.b32.xlu0 %v12, 96
    %v14 = vpop.permute.xlu0 %13
    %vm15 = vcmask 917248
    %16 = vst.msk [vmem:[#allocation0] sm:$0x1] %vm15, %v14
    %s17 = scalar_lea.vmem %s0, 5
    %v18 = vld [vmem:[%s17] sm:$0x1]
    %19 = vrot.lane.b32.xlu0 %v18, 80
    %v20 = vpop.permute.xlu0 %19
    %vm21 = vcmask 786048
    %22 = vst.msk [vmem:[#allocation0] sm:$0x1] %vm21, %v20
    %s23 = scalar_lea.vmem %s0, 4
    %v24 = vld [vmem:[%s23] sm:$0x1]
    %25 = vrot.lane.b32.xlu0 %v24, 64
    %v26 = vpop.permute.xlu0 %25
    %vm27 = vcmask 654848
    %28 = vst.msk [vmem:[#allocation0] sm:$0x1] %vm27, %v26
    %s29 = scalar_lea.vmem %s0, 3
    %v30 = vld [vmem:[%s29] sm:$0x1]
    %31 = vrot.lane.b32.xlu0 %v30, 48
    %v32 = vpop.permute.xlu0 %31
    %vm33 = vcmask 523648
    %34 = vst.msk [vmem:[#allocation0] sm:$0x1] %vm33, %v32
    %s35 = scalar_lea.vmem %s0, 2
    %v36 = vld [vmem:[%s35] sm:$0x1]
    %37 = vrot.lane.b32.xlu0 %v36, 32
    %v38 = vpop.permute.xlu0 %37
    %vm39 = vcmask 392448
    %40 = vst.msk [vmem:[#allocation0] sm:$0x1] %vm39, %v38
    %s41 = scalar_lea.vmem %s0, 1
    %v42 = vld [vmem:[%s41] sm:$0x1]
    %43 = vrot.lane.b32.xlu0 %v42, 16
    %v44 = vpop.permute.xlu0 %43
    %vm45 = vcmask 261248
    %46 = vst.msk [vmem:[#allocation0] sm:$0x1] %vm45, %v44
    %s48 = sshll.u32 1, 1
    %s49 = ssub.s32 %s48, 1
    %v51 = vld [vmem:[#allocation0] sm:%s49]
    %s52 = sshll.u32 1, 1
    %s53 = ssub.s32 %s52, 1
    %54 = vst [vmem:[%s1] sm:%s53] %v51

// kernel: down_block.1
$region0: #{down_block.1}
  #allocation0 [shape = 'u32[]', space=smem, size = 0x4, offset = 0x4, fixed_abs, tag = 'smem constant byte address 0x4 - core index']
  #allocation1 [shape = 'u32[144,128]{1,0:T(1,128)}', space=vmem, size = 0x12000, scoped, tag = 'internal scratch']
  #allocation2 [shape = 'f32[2,4,16,80]{3,2,1,0:T(8,128)}', space=vmem, size = 0x10000, scoped, tag = 'scratch operand']
  %s0 = inlined_call_operand.vmem [shape: f32[2,4,16,80], index: 0, kind: input, shape index: {}]
  %s1 = inlined_call_operand.vmem [shape: f32[5,5,64], index: 1, kind: input, shape index: {}]
  %s2 = inlined_call_operand.vmem [shape: f32[1,64], index: 2, kind: input, shape index: {}]
  %s3 = inlined_call_operand.vmem [shape: bf16[80,80], index: 3, kind: input, shape index: {}]
  %s4 = inlined_call_operand.vmem [shape: f32[1,80], index: 4, kind: input, shape index: {}]
  %s5 = inlined_call_operand.vmem [shape: f32[5,5,64], index: 5, kind: input, shape index: {}]
  %s6 = inlined_call_operand.vmem [shape: f32[1,64], index: 6, kind: input, shape index: {}]
  %s7 = inlined_call_operand.vmem [shape: bf16[64,128], index: 7, kind: input, shape index: {}]
  %s8 = inlined_call_operand.vmem [shape: bf16[64,128], index: 8, kind: input, shape index: {}]
  %s9 = inlined_call_operand.vmem [shape: f32[1,128], index: 9, kind: input, shape index: {}]
  %s10 = inlined_call_operand.vmem [shape: f32[2,8,128], index: 10, kind: output, shape index: {}]
  %s11 = sld [smem:[#allocation0]]
  $region50: #{down_block.1} parent=0
    _
  %s13 = ssub.s32 1, %s11
  %s14 = scalar_select 0, %s13, %s11
  // Predicated region
  $region2: #{down_block.1} parent=0 // pred_check
    _
  $region3: #{down_block.1} parent=0 // pred_check_branch
    %16 = sbr.rel (0) target = $region5
  $region4: #{down_block.1} parent=0 // pred_region
    _
  $region5: #{down_block.1} parent=0 // pred_fallthru
    _
  // Predicated region
  $region6: #{down_block.1} parent=0 // pred_check
    _
  $region7: #{down_block.1} parent=0 // pred_check_branch
    %18 = sbr.rel (0) target = $region9
  $region8: #{down_block.1} parent=0 // pred_region
    _
  $region9: #{down_block.1} parent=0 // pred_fallthru
    _
  // Predicated region
  $region10: #{down_block.1} parent=0 // pred_check
    _
  $region11: #{down_block.1} parent=0 // pred_check_branch
    %20 = sbr.rel (0) target = $region13
  $region12: #{down_block.1} parent=0 // pred_region
    _
  $region13: #{down_block.1} parent=0 // pred_fallthru
    _
  // Predicated region
  $region14: #{down_block.1} parent=0 // pred_check
    _
  $region15: #{down_block.1} parent=0 // pred_check_branch
    %22 = sbr.rel (0) target = $region17
  $region16: #{down_block.1} parent=0 // pred_region
    _
  $region17: #{down_block.1} parent=0 // pred_fallthru
    _
  // Predicated region
  $region18: #{down_block.1} parent=0 // pred_check
    _
  $region19: #{down_block.1} parent=0 // pred_check_branch
    %24 = sbr.rel (0) target = $region21
  $region20: #{down_block.1} parent=0 // pred_region
    _
  $region21: #{down_block.1} parent=0 // pred_fallthru
    _
  // Predicated region
  $region22: #{down_block.1} parent=0 // pred_check
    _
  $region23: #{down_block.1} parent=0 // pred_check_branch
    %26 = sbr.rel (0) target = $region25
  $region24: #{down_block.1} parent=0 // pred_region
    _
  $region25: #{down_block.1} parent=0 // pred_fallthru
    _
  // Predicated region
  $region26: #{down_block.1} parent=0 // pred_check
    _
  $region27: #{down_block.1} parent=0 // pred_check_branch
    %28 = sbr.rel (0) target = $region29
  $region28: #{down_block.1} parent=0 // pred_region
    _
  $region29: #{down_block.1} parent=0 // pred_fallthru
    _
  // Predicated region
  $region30: #{down_block.1} parent=0 // pred_check
    _
  $region31: #{down_block.1} parent=0 // pred_check_branch
    %30 = sbr.rel (0) target = $region33
  $region32: #{down_block.1} parent=0 // pred_region
    _
  $region33: #{down_block.1} parent=0 // pred_fallthru
    _
  // Predicated region
  $region34: #{down_block.1} parent=0 // pred_check
    _
  $region35: #{down_block.1} parent=0 // pred_check_branch
    %32 = sbr.rel (0) target = $region37
  $region36: #{down_block.1} parent=0 // pred_region
    _
  $region37: #{down_block.1} parent=0 // pred_fallthru
    _
  // Predicated region
  $region38: #{down_block.1} parent=0 // pred_check
    _
  $region39: #{down_block.1} parent=0 // pred_check_branch
    %34 = sbr.rel (0) target = $region41
  $region40: #{down_block.1} parent=0 // pred_region
    _
  $region41: #{down_block.1} parent=0 // pred_fallthru
    _
  %v36 = vld [vmem:[%s0] sm:$0xff]
  %v37 = vld [vmem:[%s0 + $0x8] sm:$0xff]
  %v38 = vld [vmem:[%s0 + $0x10] sm:$0xff]
  %v39 = vld [vmem:[%s0 + $0x18] sm:$0xff]
  %v40 = vld [vmem:[%s0 + $0x20] sm:$0xff]
  %v41 = vld [vmem:[%s0 + $0x28] sm:$0xff]
  %v42 = vld [vmem:[%s0 + $0x30] sm:$0xff]
  %v43 = vld [vmem:[%s0 + $0x38] sm:$0xff]
  %v44 = vld [vmem:[%s0 + $0x40] sm:$0xff]
  %v45 = vld [vmem:[%s0 + $0x48] sm:$0xff]
  %v46 = vld [vmem:[%s0 + $0x50] sm:$0xff]
  %v47 = vld [vmem:[%s0 + $0x58] sm:$0xff]
  %v48 = vld [vmem:[%s0 + $0x60] sm:$0xff]
  %v49 = vld [vmem:[%s0 + $0x68] sm:$0xff]
  %v50 = vld [vmem:[%s0 + $0x70] sm:$0xff]
  %v51 = vld [vmem:[%s0 + $0x78] sm:$0xff]
  %v52 = vpack.c.bf16 %v37, %v36
  %v53 = vpack.c.bf16 %v39, %v38
  %v54 = vpack.c.bf16 %v41, %v40
  %v55 = vpack.c.bf16 %v43, %v42
  %v56 = vpack.c.bf16 %v45, %v44
  %v57 = vpack.c.bf16 %v47, %v46
  %v58 = vpack.c.bf16 %v49, %v48
  %v59 = vpack.c.bf16 %v51, %v50
  %v60 = vld [vmem:[%s3] sm:$0xf]
  %v61 = vld [vmem:[%s3 + $0x4] sm:$0xf]
  %v62 = vld [vmem:[%s3 + $0x8] sm:$0xf]
  %v63 = vld [vmem:[%s3 + $0xc] sm:$0xf]
  %v64 = vld [vmem:[%s3 + $0x10] sm:$0xf]
  %v65 = vld [vmem:[%s3 + $0x14] sm:$0xf]
  %v66 = vld [vmem:[%s3 + $0x18] sm:$0xf]
  %v67 = vld [vmem:[%s3 + $0x1c] sm:$0xf]
  %v68 = vld [vmem:[%s3 + $0x20] sm:$0xf]
  %v69 = vld [vmem:[%s3 + $0x24] sm:$0xf]
  %v70 = vld [vmem:[%s4] sm:$0x1]
  %v72 = vlaneseq
  %v73 = vshrl.u32 %v72, 7
  %v74 = vsub.s32 0, %v73
  %v75 = vrot.slane %v70, %v74
  %v87 = vunpack.c.l.b16 %v60
  %v88 = vunpack.c.l.b16 %v61
  %v89 = vunpack.c.l.b16 %v62
  %v90 = vunpack.c.l.b16 %v63
  %v91 = vunpack.c.l.b16 %v64
  %v92 = vunpack.c.l.b16 %v65
  %v93 = vunpack.c.l.b16 %v66
  %v94 = vunpack.c.l.b16 %v67
  %v95 = vunpack.c.l.b16 %v68
  %v96 = vunpack.c.l.b16 %v69
  %v97 = vpack.c.b16 %v88, %v87
  %v98 = vpack.c.b16 %v90, %v89
  %v99 = vpack.c.b16 %v92, %v91
  %v100 = vpack.c.b16 %v94, %v93
  %v101 = vpack.c.b16 %v96, %v95
  %vm107 = vcmask 654336
  %v109 = vsel %vm107, %v52, 0
  %v112 = vsel %vm107, %v53, 0
  %v115 = vsel %vm107, %v54, 0
  %v118 = vsel %vm107, %v55, 0
  %v121 = vsel %vm107, %v56, 0
  %v124 = vsel %vm107, %v57, 0
  %v127 = vsel %vm107, %v58, 0
  %v130 = vsel %vm107, %v59, 0
  %132 = vmatprep.subr.bf16.mxu0 0
  %133 = vmatpush1.bf16.msra.mxu0 0
  %134 = vmatprep.subr.bf16.mxu0 0
  %135 = vmatpush1.bf16.msra.mxu0 0
  %136 = vmatprep.subr.bf16.mxu0 0
  %137 = vmatpush1.bf16.msra.mxu0 0
  %138 = vmatprep.subr.bf16.mxu0 0
  %139 = vmatpush1.bf16.msra.mxu0 %v101
  %140 = vmatprep.subr.bf16.mxu0 0
  %141 = vmatpush1.bf16.msra.mxu0 %v100
  %142 = vmatprep.subr.bf16.mxu0 0
  %143 = vmatpush1.bf16.msra.mxu0 %v99
  %144 = vmatprep.subr.bf16.mxu0 0
  %145 = vmatpush1.bf16.msra.mxu0 %v98
  %146 = vmatprep.subr.bf16.mxu0 0
  %147 = vmatpush1.bf16.msra.mxu0 %v97
  %148 = vmatprep.subr.bf16.mxu0 0
  %149 = vmatpush2.bf16.msra.mxu0 0
  %150 = vmatprep.subr.bf16.mxu0 0
  %151 = vmatpush2.bf16.msra.mxu0 0
  %152 = vmatprep.subr.bf16.mxu0 0
  %153 = vmatpush2.bf16.msra.mxu0 0
  %154 = vmatprep.subr.bf16.mxu0 0
  %155 = vmatpush2.bf16.msra.mxu0 0
  %156 = vmatprep.subr.bf16.mxu0 0
  %157 = vmatpush2.bf16.msra.mxu0 0
  %158 = vmatprep.subr.bf16.mxu0 0
  %159 = vmatpush2.bf16.msra.mxu0 0
  %160 = vmatprep.subr.bf16.mxu0 0
  %161 = vmatpush2.bf16.msra.mxu0 0
  %162 = vmatprep.subr.bf16.mxu0 0
  %163 = vmatpush2.bf16.msra.mxu0 0
  %164 = vmatprep.mubr.bf16.mxu0 0
  %165 = vmatmul.mubr.bf16.gmra.mxu0 %v109
  %v166 = vpop.f32.mrf.mxu0
  %v167 = vadd.f32 %v75, %v166
  %v168 = vpop.f32.mrf.mxu0
  %v169 = vpop.f32.mrf.mxu0
  %v170 = vadd.f32 %v75, %v169
  %v171 = vpop.f32.mrf.mxu0
  %172 = vmatprep.mubr.bf16.mxu0 0
  %173 = vmatmul.mubr.bf16.gmra.mxu0 %v112
  %v174 = vpop.f32.mrf.mxu0
  %v175 = vadd.f32 %v75, %v174
  %v176 = vpop.f32.mrf.mxu0
  %v177 = vpop.f32.mrf.mxu0
  %v178 = vadd.f32 %v75, %v177
  %v179 = vpop.f32.mrf.mxu0
  %180 = vmatprep.mubr.bf16.mxu0 0
  %181 = vmatmul.mubr.bf16.gmra.mxu0 %v115
  %v182 = vpop.f32.mrf.mxu0
  %v183 = vadd.f32 %v75, %v182
  %v184 = vpop.f32.mrf.mxu0
  %v185 = vpop.f32.mrf.mxu0
  %v186 = vadd.f32 %v75, %v185
  %v187 = vpop.f32.mrf.mxu0
  %188 = vmatprep.mubr.bf16.mxu0 0
  %189 = vmatmul.mubr.bf16.gmra.mxu0 %v118
  %v190 = vpop.f32.mrf.mxu0
  %v191 = vadd.f32 %v75, %v190
  %v192 = vpop.f32.mrf.mxu0
  %v193 = vpop.f32.mrf.mxu0
  %v194 = vadd.f32 %v75, %v193
  %v195 = vpop.f32.mrf.mxu0
  %196 = vmatprep.mubr.bf16.mxu0 0
  %197 = vmatmul.mubr.bf16.gmra.mxu0 %v121
  %v198 = vpop.f32.mrf.mxu0
  %v199 = vadd.f32 %v75, %v198
  %v200 = vpop.f32.mrf.mxu0
  %v201 = vpop.f32.mrf.mxu0
  %v202 = vadd.f32 %v75, %v201
  %v203 = vpop.f32.mrf.mxu0
  %204 = vmatprep.mubr.bf16.mxu0 0
  %205 = vmatmul.mubr.bf16.gmra.mxu0 %v124
  %v206 = vpop.f32.mrf.mxu0
  %v207 = vadd.f32 %v75, %v206
  %v208 = vpop.f32.mrf.mxu0
  %v209 = vpop.f32.mrf.mxu0
  %v210 = vadd.f32 %v75, %v209
  %v211 = vpop.f32.mrf.mxu0
  %212 = vmatprep.mubr.bf16.mxu0 0
  %213 = vmatmul.mubr.bf16.gmra.mxu0 %v127
  %v214 = vpop.f32.mrf.mxu0
  %v215 = vadd.f32 %v75, %v214
  %v216 = vpop.f32.mrf.mxu0
  %v217 = vpop.f32.mrf.mxu0
  %v218 = vadd.f32 %v75, %v217
  %v219 = vpop.f32.mrf.mxu0
  %220 = vmatprep.mubr.bf16.mxu0 0
  %221 = vmatmul.mubr.bf16.gmra.mxu0 %v130
  %v222 = vpop.f32.mrf.mxu0
  %v223 = vadd.f32 %v75, %v222
  %v224 = vpop.f32.mrf.mxu0
  %v225 = vpop.f32.mrf.mxu0
  %v226 = vadd.f32 %v75, %v225
  %v227 = vpop.f32.mrf.mxu0
  %228 = vdwg.mxu0
  %v229 = vmax.f32 %v167, 0.0
  %v230 = vmax.f32 %v170, 0.0
  %v231 = vmax.f32 %v175, 0.0
  %v232 = vmax.f32 %v178, 0.0
  %v233 = vmax.f32 %v183, 0.0
  %v234 = vmax.f32 %v186, 0.0
  %v235 = vmax.f32 %v191, 0.0
  %v236 = vmax.f32 %v194, 0.0
  %v237 = vmax.f32 %v199, 0.0
  %v238 = vmax.f32 %v202, 0.0
  %v239 = vmax.f32 %v207, 0.0
  %v240 = vmax.f32 %v210, 0.0
  %v241 = vmax.f32 %v215, 0.0
  %v242 = vmax.f32 %v218, 0.0
  %v243 = vmax.f32 %v223, 0.0
  %v244 = vmax.f32 %v226, 0.0
  %v245 = vlaneseq
  %v246 = vshrl.u32 %v245, 7
  %v247 = vadd.s32 %v246, 8
  %v248 = vlaneseq
  %v249 = vand.u32 %v248, 127
  %vm250 = vcmp.ge.s32.totalorder %v246, 1
  %vm251 = vcmp.ge.s32.totalorder %v247, 1
  %vm252 = vcmp.le.s32.totalorder %v246, 8
  %vm253 = vcmp.le.s32.totalorder %v247, 8
  %vm254 = vmand %vm250, %vm252
  %vm255 = vmand %vm251, %vm253
  %vm256 = vcmp.ge.s32.totalorder %v249, 8
  %vm257 = vmand %vm254, %vm256
  %vm258 = vmand %vm255, %vm256
  %vm259 = vcmp.lt.s32.totalorder %v249, 72
  %vm260 = vmand %vm257, %vm259
  %vm261 = vmand %vm258, %vm259
  %v262 = vsel %vm260, %v229, 0.0
  %v263 = vsel %vm261, %v230, 0.0
  %v264 = vsel %vm260, %v231, 0.0
  %v265 = vsel %vm261, %v232, 0.0
  %v266 = vsel %vm260, %v233, 0.0
  %v267 = vsel %vm261, %v234, 0.0
  %v268 = vsel %vm260, %v235, 0.0
  %v269 = vsel %vm261, %v236, 0.0
  %v270 = vsel %vm260, %v237, 0.0
  %v271 = vsel %vm261, %v238, 0.0
  %v272 = vsel %vm260, %v239, 0.0
  %v273 = vsel %vm261, %v240, 0.0
  %v274 = vsel %vm260, %v241, 0.0
  %v275 = vsel %vm261, %v242, 0.0
  %v276 = vsel %vm260, %v243, 0.0
  %v277 = vsel %vm261, %v244, 0.0
  %278 = vst.msk [vmem:[#allocation2] sm:$0xff] %vm107, %v262
  %279 = vst.msk [vmem:[#allocation2 + $0x8] sm:$0xff] %vm107, %v263
  %280 = vst.msk [vmem:[#allocation2 + $0x10] sm:$0xff] %vm107, %v264
  %281 = vst.msk [vmem:[#allocation2 + $0x18] sm:$0xff] %vm107, %v265
  %282 = vst.msk [vmem:[#allocation2 + $0x20] sm:$0xff] %vm107, %v266
  %283 = vst.msk [vmem:[#allocation2 + $0x28] sm:$0xff] %vm107, %v267
  %284 = vst.msk [vmem:[#allocation2 + $0x30] sm:$0xff] %vm107, %v268
  %285 = vst.msk [vmem:[#allocation2 + $0x38] sm:$0xff] %vm107, %v269
  %286 = vst.msk [vmem:[#allocation2 + $0x40] sm:$0xff] %vm107, %v270
  %287 = vst.msk [vmem:[#allocation2 + $0x48] sm:$0xff] %vm107, %v271
  %288 = vst.msk [vmem:[#allocation2 + $0x50] sm:$0xff] %vm107, %v272
  %289 = vst.msk [vmem:[#allocation2 + $0x58] sm:$0xff] %vm107, %v273
  %290 = vst.msk [vmem:[#allocation2 + $0x60] sm:$0xff] %vm107, %v274
  %291 = vst.msk [vmem:[#allocation2 + $0x68] sm:$0xff] %vm107, %v275
  %292 = vst.msk [vmem:[#allocation2 + $0x70] sm:$0xff] %vm107, %v276
  %293 = vst.msk [vmem:[#allocation2 + $0x78] sm:$0xff] %vm107, %v277
  %v294 = vld [vmem:[%s1] sm:$0x1f]
  %v295 = vld [vmem:[%s1 + $0x8] sm:$0x1f]
  %v296 = vld [vmem:[%s1 + $0x10] sm:$0x1f]
  %v297 = vld [vmem:[%s1 + $0x18] sm:$0x1f]
  %v298 = vld [vmem:[%s1 + $0x20] sm:$0x1f]
  %v299 = vld [vmem:[%s5] sm:$0x1f]
  %v300 = vld [vmem:[%s5 + $0x8] sm:$0x1f]
  %v301 = vld [vmem:[%s5 + $0x10] sm:$0x1f]
  %v302 = vld [vmem:[%s5 + $0x18] sm:$0x1f]
  %v303 = vld [vmem:[%s5 + $0x20] sm:$0x1f]
  %v304 = vld [vmem:[%s0] sm:$0xff]
  %v305 = vld [vmem:[%s0 + $0x40] sm:$0xff]
  %v306 = vlaneseq
  %v307 = vshrl.u32 %v306, 7
  %v308 = vsub.s32 0, %v307
  %v309 = vrot.slane %v294, %v308
  %v310 = vmul.f32 %v304, %v309
  %v311 = vmul.f32 %v305, %v309
  %v312 = vadd.f32 %v310, 0.0
  %v313 = vadd.f32 %v311, 0.0
  %v314 = vld [vmem:[#allocation2] sm:$0xff]
  %v315 = vld [vmem:[#allocation2 + $0x40] sm:$0xff]
  %v316 = vlaneseq
  %v317 = vshrl.u32 %v316, 7
  %v318 = vsub.s32 0, %v317
  %v319 = vrot.slane %v299, %v318
  %v320 = vmul.f32 %v314, %v319
  %v321 = vmul.f32 %v315, %v319
  %v322 = vadd.f32 %v320, 0.0
  %v323 = vadd.f32 %v321, 0.0
  %s324 = scalar_lea.vmem %s0, 16
  %v325 = vld [vmem:[%s324] sm:$0xff]
  %v326 = vld [vmem:[%s324 + $0x40] sm:$0xff]
  %v327 = vlaneseq
  %v328 = vshrl.u32 %v327, 7
  %v329 = vsub.s32 1, %v328
  %v330 = vrot.slane %v294, %v329
  %v331 = vmul.f32 %v325, %v330
  %v332 = vmul.f32 %v326, %v330
  %v333 = vadd.f32 %v312, %v331
  %v334 = vadd.f32 %v313, %v332
  %s335 = scalar_lea.vmem [#allocation2], 16
  %v336 = vld [vmem:[%s335] sm:$0xff]
  %v337 = vld [vmem:[%s335 + $0x40] sm:$0xff]
  %v338 = vlaneseq
  %v339 = vshrl.u32 %v338, 7
  %v340 = vsub.s32 1, %v339
  %v341 = vrot.slane %v299, %v340
  %v342 = vmul.f32 %v336, %v341
  %v343 = vmul.f32 %v337, %v341
  %v344 = vadd.f32 %v322, %v342
  %v345 = vadd.f32 %v323, %v343
  %v346 = vlaneseq
  %v347 = vshrl.u32 %v346, 7
  %v348 = vsub.s32 2, %v347
  %v349 = vrot.slane %v294, %v348
  %351 = vrot.lane.b32.xlu0 %v349, 8
  %v352 = vpop.permute.xlu0 %351
  %v354 = vmul.f32 %v304, %v352
  %v355 = vmul.f32 %v305, %v352
  %358 = vrot.lane.b32.xlu0 %v354, 120
  %v359 = vpop.permute.xlu0 %358
  %360 = vrot.lane.b32.xlu0 %v355, 120
  %v361 = vpop.permute.xlu0 %360
  %v364 = vadd.f32 %v333, %v359
  %v365 = vadd.f32 %v334, %v361
  %v366 = vlaneseq
  %v367 = vshrl.u32 %v366, 7
  %v368 = vsub.s32 2, %v367
  %v369 = vrot.slane %v299, %v368
  %371 = vrot.lane.b32.xlu0 %v369, 8
  %v372 = vpop.permute.xlu0 %371
  %v374 = vmul.f32 %v314, %v372
  %v375 = vmul.f32 %v315, %v372
  %378 = vrot.lane.b32.xlu0 %v374, 120
  %v379 = vpop.permute.xlu0 %378
  %380 = vrot.lane.b32.xlu0 %v375, 120
  %v381 = vpop.permute.xlu0 %380
  %v384 = vadd.f32 %v344, %v379
  %v385 = vadd.f32 %v345, %v381
  %v386 = vlaneseq
  %v387 = vshrl.u32 %v386, 7
  %v388 = vsub.s32 3, %v387
  %v389 = vrot.slane %v294, %v388
  %391 = vrot.lane.b32.xlu0 %v389, 8
  %v392 = vpop.permute.xlu0 %391
  %v394 = vmul.f32 %v325, %v392
  %v395 = vmul.f32 %v326, %v392
  %398 = vrot.lane.b32.xlu0 %v394, 120
  %v399 = vpop.permute.xlu0 %398
  %400 = vrot.lane.b32.xlu0 %v395, 120
  %v401 = vpop.permute.xlu0 %400
  %v404 = vadd.f32 %v364, %v399
  %v405 = vadd.f32 %v365, %v401
  %v406 = vlaneseq
  %v407 = vshrl.u32 %v406, 7
  %v408 = vsub.s32 3, %v407
  %v409 = vrot.slane %v299, %v408
  %411 = vrot.lane.b32.xlu0 %v409, 8
  %v412 = vpop.permute.xlu0 %411
  %v414 = vmul.f32 %v336, %v412
  %v415 = vmul.f32 %v337, %v412
  %418 = vrot.lane.b32.xlu0 %v414, 120
  %v419 = vpop.permute.xlu0 %418
  %420 = vrot.lane.b32.xlu0 %v415, 120
  %v421 = vpop.permute.xlu0 %420
  %v424 = vadd.f32 %v384, %v419
  %v425 = vadd.f32 %v385, %v421
  %v426 = vlaneseq
  %v427 = vshrl.u32 %v426, 7
  %v428 = vsub.s32 4, %v427
  %v429 = vrot.slane %v294, %v428
  %431 = vrot.lane.b32.xlu0 %v429, 16
  %v432 = vpop.permute.xlu0 %431
  %v434 = vmul.f32 %v304, %v432
  %v435 = vmul.f32 %v305, %v432
  %438 = vrot.lane.b32.xlu0 %v434, 112
  %v439 = vpop.permute.xlu0 %438
  %440 = vrot.lane.b32.xlu0 %v435, 112
  %v441 = vpop.permute.xlu0 %440
  %v444 = vadd.f32 %v404, %v439
  %v445 = vadd.f32 %v405, %v441
  %v446 = vlaneseq
  %v447 = vshrl.u32 %v446, 7
  %v448 = vsub.s32 4, %v447
  %v449 = vrot.slane %v299, %v448
  %451 = vrot.lane.b32.xlu0 %v449, 16
  %v452 = vpop.permute.xlu0 %451
  %v454 = vmul.f32 %v314, %v452
  %v455 = vmul.f32 %v315, %v452
  %458 = vrot.lane.b32.xlu0 %v454, 112
  %v459 = vpop.permute.xlu0 %458
  %460 = vrot.lane.b32.xlu0 %v455, 112
  %v461 = vpop.permute.xlu0 %460
  %v464 = vadd.f32 %v424, %v459
  %v465 = vadd.f32 %v425, %v461
  %s466 = scalar_lea.vmem %s0, 32
  %v467 = vld [vmem:[%s466] sm:$0xff]
  %v468 = vld [vmem:[%s466 + $0x40] sm:$0xff]
  %v469 = vlaneseq
  %v470 = vshrl.u32 %v469, 7
  %v471 = vsub.s32 0, %v470
  %v472 = vrot.slane %v295, %v471
  %v473 = vmul.f32 %v467, %v472
  %v474 = vmul.f32 %v468, %v472
  %v475 = vadd.f32 %v444, %v473
  %v476 = vadd.f32 %v445, %v474
  %s477 = scalar_lea.vmem [#allocation2], 32
  %v478 = vld [vmem:[%s477] sm:$0xff]
  %v479 = vld [vmem:[%s477 + $0x40] sm:$0xff]
  %v480 = vlaneseq
  %v481 = vshrl.u32 %v480, 7
  %v482 = vsub.s32 0, %v481
  %v483 = vrot.slane %v300, %v482
  %v484 = vmul.f32 %v478, %v483
  %v485 = vmul.f32 %v479, %v483
  %v486 = vadd.f32 %v464, %v484
  %v487 = vadd.f32 %v465, %v485
  %s488 = scalar_lea.vmem %s0, 48
  %v489 = vld [vmem:[%s488] sm:$0xff]
  %v490 = vld [vmem:[%s488 + $0x40] sm:$0xff]
  %v491 = vlaneseq
  %v492 = vshrl.u32 %v491, 7
  %v493 = vsub.s32 1, %v492
  %v494 = vrot.slane %v295, %v493
  %v495 = vmul.f32 %v489, %v494
  %v496 = vmul.f32 %v490, %v494
  %v497 = vadd.f32 %v475, %v495
  %v498 = vadd.f32 %v476, %v496
  %s499 = scalar_lea.vmem [#allocation2], 48
  %v500 = vld [vmem:[%s499] sm:$0xff]
  %v501 = vld [vmem:[%s499 + $0x40] sm:$0xff]
  %v502 = vlaneseq
  %v503 = vshrl.u32 %v502, 7
  %v504 = vsub.s32 1, %v503
  %v505 = vrot.slane %v300, %v504
  %v506 = vmul.f32 %v500, %v505
  %v507 = vmul.f32 %v501, %v505
  %v508 = vadd.f32 %v486, %v506
  %v509 = vadd.f32 %v487, %v507
  %v510 = vlaneseq
  %v511 = vshrl.u32 %v510, 7
  %v512 = vsub.s32 2, %v511
  %v513 = vrot.slane %v295, %v512
  %515 = vrot.lane.b32.xlu0 %v513, 8
  %v516 = vpop.permute.xlu0 %515
  %v518 = vmul.f32 %v467, %v516
  %v519 = vmul.f32 %v468, %v516
  %522 = vrot.lane.b32.xlu0 %v518, 120
  %v523 = vpop.permute.xlu0 %522
  %524 = vrot.lane.b32.xlu0 %v519, 120
  %v525 = vpop.permute.xlu0 %524
  %v528 = vadd.f32 %v497, %v523
  %v529 = vadd.f32 %v498, %v525
  %v530 = vlaneseq
  %v531 = vshrl.u32 %v530, 7
  %v532 = vsub.s32 2, %v531
  %v533 = vrot.slane %v300, %v532
  %535 = vrot.lane.b32.xlu0 %v533, 8
  %v536 = vpop.permute.xlu0 %535
  %v538 = vmul.f32 %v478, %v536
  %v539 = vmul.f32 %v479, %v536
  %542 = vrot.lane.b32.xlu0 %v538, 120
  %v543 = vpop.permute.xlu0 %542
  %544 = vrot.lane.b32.xlu0 %v539, 120
  %v545 = vpop.permute.xlu0 %544
  %v548 = vadd.f32 %v508, %v543
  %v549 = vadd.f32 %v509, %v545
  %v550 = vlaneseq
  %v551 = vshrl.u32 %v550, 7
  %v552 = vsub.s32 3, %v551
  %v553 = vrot.slane %v295, %v552
  %555 = vrot.lane.b32.xlu0 %v553, 8
  %v556 = vpop.permute.xlu0 %555
  %v558 = vmul.f32 %v489, %v556
  %v559 = vmul.f32 %v490, %v556
  %562 = vrot.lane.b32.xlu0 %v558, 120
  %v563 = vpop.permute.xlu0 %562
  %564 = vrot.lane.b32.xlu0 %v559, 120
  %v565 = vpop.permute.xlu0 %564
  %v568 = vadd.f32 %v528, %v563
  %v569 = vadd.f32 %v529, %v565
  %v570 = vlaneseq
  %v571 = vshrl.u32 %v570, 7
  %v572 = vsub.s32 3, %v571
  %v573 = vrot.slane %v300, %v572
  %575 = vrot.lane.b32.xlu0 %v573, 8
  %v576 = vpop.permute.xlu0 %575
  %v578 = vmul.f32 %v500, %v576
  %v579 = vmul.f32 %v501, %v576
  %582 = vrot.lane.b32.xlu0 %v578, 120
  %v583 = vpop.permute.xlu0 %582
  %584 = vrot.lane.b32.xlu0 %v579, 120
  %v585 = vpop.permute.xlu0 %584
  %v588 = vadd.f32 %v548, %v583
  %v589 = vadd.f32 %v549, %v585
  %v590 = vlaneseq
  %v591 = vshrl.u32 %v590, 7
  %v592 = vsub.s32 4, %v591
  %v593 = vrot.slane %v295, %v592
  %595 = vrot.lane.b32.xlu0 %v593, 16
  %v596 = vpop.permute.xlu0 %595
  %v598 = vmul.f32 %v467, %v596
  %v599 = vmul.f32 %v468, %v596
  %602 = vrot.lane.b32.xlu0 %v598, 112
  %v603 = vpop.permute.xlu0 %602
  %604 = vrot.lane.b32.xlu0 %v599, 112
  %v605 = vpop.permute.xlu0 %604
  %v608 = vadd.f32 %v568, %v603
  %v609 = vadd.f32 %v569, %v605
  %v610 = vlaneseq
  %v611 = vshrl.u32 %v610, 7
  %v612 = vsub.s32 4, %v611
  %v613 = vrot.slane %v300, %v612
  %615 = vrot.lane.b32.xlu0 %v613, 16
  %v616 = vpop.permute.xlu0 %615
  %v618 = vmul.f32 %v478, %v616
  %v619 = vmul.f32 %v479, %v616
  %622 = vrot.lane.b32.xlu0 %v618, 112
  %v623 = vpop.permute.xlu0 %622
  %624 = vrot.lane.b32.xlu0 %v619, 112
  %v625 = vpop.permute.xlu0 %624
  %v628 = vadd.f32 %v588, %v623
  %v629 = vadd.f32 %v589, %v625
  %v630 = vld [vmem:[%s0 + $0x1] sm:$0xff]
  %v631 = vld [vmem:[%s0 + $0x41] sm:$0xff]
  %v632 = vlaneseq
  %v633 = vshrl.u32 %v632, 7
  %v634 = vsub.s32 0, %v633
  %v635 = vrot.slane %v296, %v634
  %v636 = vmul.f32 %v630, %v635
  %v637 = vmul.f32 %v631, %v635
  %v638 = vadd.f32 %v608, %v636
  %v639 = vadd.f32 %v609, %v637
  %v640 = vld [vmem:[#allocation2 + $0x1] sm:$0xff]
  %v641 = vld [vmem:[#allocation2 + $0x41] sm:$0xff]
  %v642 = vlaneseq
  %v643 = vshrl.u32 %v642, 7
  %v644 = vsub.s32 0, %v643
  %v645 = vrot.slane %v301, %v644
  %v646 = vmul.f32 %v640, %v645
  %v647 = vmul.f32 %v641, %v645
  %v648 = vadd.f32 %v628, %v646
  %v649 = vadd.f32 %v629, %v647
  %v650 = vld [vmem:[%s324 + $0x1] sm:$0xff]
  %v651 = vld [vmem:[%s324 + $0x41] sm:$0xff]
  %v652 = vlaneseq
  %v653 = vshrl.u32 %v652, 7
  %v654 = vsub.s32 1, %v653
  %v655 = vrot.slane %v296, %v654
  %v656 = vmul.f32 %v650, %v655
  %v657 = vmul.f32 %v651, %v655
  %v658 = vadd.f32 %v638, %v656
  %v659 = vadd.f32 %v639, %v657
  %v660 = vld [vmem:[%s335 + $0x1] sm:$0xff]
  %v661 = vld [vmem:[%s335 + $0x41] sm:$0xff]
  %v662 = vlaneseq
  %v663 = vshrl.u32 %v662, 7
  %v664 = vsub.s32 1, %v663
  %v665 = vrot.slane %v301, %v664
  %v666 = vmul.f32 %v660, %v665
  %v667 = vmul.f32 %v661, %v665
  %v668 = vadd.f32 %v648, %v666
  %v669 = vadd.f32 %v649, %v667
  %v670 = vlaneseq
  %v671 = vshrl.u32 %v670, 7
  %v672 = vsub.s32 2, %v671
  %v673 = vrot.slane %v296, %v672
  %675 = vrot.lane.b32.xlu0 %v673, 8
  %v676 = vpop.permute.xlu0 %675
  %v678 = vmul.f32 %v630, %v676
  %v679 = vmul.f32 %v631, %v676
  %682 = vrot.lane.b32.xlu0 %v678, 120
  %v683 = vpop.permute.xlu0 %682
  %684 = vrot.lane.b32.xlu0 %v679, 120
  %v685 = vpop.permute.xlu0 %684
  %v688 = vadd.f32 %v658, %v683
  %v689 = vadd.f32 %v659, %v685
  %v690 = vlaneseq
  %v691 = vshrl.u32 %v690, 7
  %v692 = vsub.s32 2, %v691
  %v693 = vrot.slane %v301, %v692
  %695 = vrot.lane.b32.xlu0 %v693, 8
  %v696 = vpop.permute.xlu0 %695
  %v698 = vmul.f32 %v640, %v696
  %v699 = vmul.f32 %v641, %v696
  %702 = vrot.lane.b32.xlu0 %v698, 120
  %v703 = vpop.permute.xlu0 %702
  %704 = vrot.lane.b32.xlu0 %v699, 120
  %v705 = vpop.permute.xlu0 %704
  %v708 = vadd.f32 %v668, %v703
  %v709 = vadd.f32 %v669, %v705
  %v710 = vlaneseq
  %v711 = vshrl.u32 %v710, 7
  %v712 = vsub.s32 3, %v711
  %v713 = vrot.slane %v296, %v712
  %715 = vrot.lane.b32.xlu0 %v713, 8
  %v716 = vpop.permute.xlu0 %715
  %v718 = vmul.f32 %v650, %v716
  %v719 = vmul.f32 %v651, %v716
  %722 = vrot.lane.b32.xlu0 %v718, 120
  %v723 = vpop.permute.xlu0 %722
  %724 = vrot.lane.b32.xlu0 %v719, 120
  %v725 = vpop.permute.xlu0 %724
  %v728 = vadd.f32 %v688, %v723
  %v729 = vadd.f32 %v689, %v725
  %v730 = vlaneseq
  %v731 = vshrl.u32 %v730, 7
  %v732 = vsub.s32 3, %v731
  %v733 = vrot.slane %v301, %v732
  %735 = vrot.lane.b32.xlu0 %v733, 8
  %v736 = vpop.permute.xlu0 %735
  %v738 = vmul.f32 %v660, %v736
  %v739 = vmul.f32 %v661, %v736
  %742 = vrot.lane.b32.xlu0 %v738, 120
  %v743 = vpop.permute.xlu0 %742
  %744 = vrot.lane.b32.xlu0 %v739, 120
  %v745 = vpop.permute.xlu0 %744
  %v748 = vadd.f32 %v708, %v743
  %v749 = vadd.f32 %v709, %v745
  %v750 = vlaneseq
  %v751 = vshrl.u32 %v750, 7
  %v752 = vsub.s32 4, %v751
  %v753 = vrot.slane %v296, %v752
  %755 = vrot.lane.b32.xlu0 %v753, 16
  %v756 = vpop.permute.xlu0 %755
  %v758 = vmul.f32 %v630, %v756
  %v759 = vmul.f32 %v631, %v756
  %762 = vrot.lane.b32.xlu0 %v758, 112
  %v763 = vpop.permute.xlu0 %762
  %764 = vrot.lane.b32.xlu0 %v759, 112
  %v765 = vpop.permute.xlu0 %764
  %v768 = vadd.f32 %v728, %v763
  %v769 = vadd.f32 %v729, %v765
  %v770 = vlaneseq
  %v771 = vshrl.u32 %v770, 7
  %v772 = vsub.s32 4, %v771
  %v773 = vrot.slane %v301, %v772
  %775 = vrot.lane.b32.xlu0 %v773, 16
  %v776 = vpop.permute.xlu0 %775
  %v778 = vmul.f32 %v640, %v776
  %v779 = vmul.f32 %v641, %v776
  %782 = vrot.lane.b32.xlu0 %v778, 112
  %v783 = vpop.permute.xlu0 %782
  %784 = vrot.lane.b32.xlu0 %v779, 112
  %v785 = vpop.permute.xlu0 %784
  %v788 = vadd.f32 %v748, %v783
  %v789 = vadd.f32 %v749, %v785
  %v790 = vld [vmem:[%s466 + $0x1] sm:$0xff]
  %v791 = vld [vmem:[%s466 + $0x41] sm:$0xff]
  %v792 = vlaneseq
  %v793 = vshrl.u32 %v792, 7
  %v794 = vsub.s32 0, %v793
  %v795 = vrot.slane %v297, %v794
  %v796 = vmul.f32 %v790, %v795
  %v797 = vmul.f32 %v791, %v795
  %v798 = vadd.f32 %v768, %v796
  %v799 = vadd.f32 %v769, %v797
  %v800 = vld [vmem:[%s477 + $0x1] sm:$0xff]
  %v801 = vld [vmem:[%s477 + $0x41] sm:$0xff]
  %v802 = vlaneseq
  %v803 = vshrl.u32 %v802, 7
  %v804 = vsub.s32 0, %v803
  %v805 = vrot.slane %v302, %v804
  %v806 = vmul.f32 %v800, %v805
  %v807 = vmul.f32 %v801, %v805
  %v808 = vadd.f32 %v788, %v806
  %v809 = vadd.f32 %v789, %v807
  %v810 = vld [vmem:[%s488 + $0x1] sm:$0xff]
  %v811 = vld [vmem:[%s488 + $0x41] sm:$0xff]
  %v812 = vlaneseq
  %v813 = vshrl.u32 %v812, 7
  %v814 = vsub.s32 1, %v813
  %v815 = vrot.slane %v297, %v814
  %v816 = vmul.f32 %v810, %v815
  %v817 = vmul.f32 %v811, %v815
  %v818 = vadd.f32 %v798, %v816
  %v819 = vadd.f32 %v799, %v817
  %v820 = vld [vmem:[%s499 + $0x1] sm:$0xff]
  %v821 = vld [vmem:[%s499 + $0x41] sm:$0xff]
  %v822 = vlaneseq
  %v823 = vshrl.u32 %v822, 7
  %v824 = vsub.s32 1, %v823
  %v825 = vrot.slane %v302, %v824
  %v826 = vmul.f32 %v820, %v825
  %v827 = vmul.f32 %v821, %v825
  %v828 = vadd.f32 %v808, %v826
  %v829 = vadd.f32 %v809, %v827
  %v830 = vlaneseq
  %v831 = vshrl.u32 %v830, 7
  %v832 = vsub.s32 2, %v831
  %v833 = vrot.slane %v297, %v832
  %835 = vrot.lane.b32.xlu0 %v833, 8
  %v836 = vpop.permute.xlu0 %835
  %v838 = vmul.f32 %v790, %v836
  %v839 = vmul.f32 %v791, %v836
  %842 = vrot.lane.b32.xlu0 %v838, 120
  %v843 = vpop.permute.xlu0 %842
  %844 = vrot.lane.b32.xlu0 %v839, 120
  %v845 = vpop.permute.xlu0 %844
  %v848 = vadd.f32 %v818, %v843
  %v849 = vadd.f32 %v819, %v845
  %v850 = vlaneseq
  %v851 = vshrl.u32 %v850, 7
  %v852 = vsub.s32 2, %v851
  %v853 = vrot.slane %v302, %v852
  %855 = vrot.lane.b32.xlu0 %v853, 8
  %v856 = vpop.permute.xlu0 %855
  %v858 = vmul.f32 %v800, %v856
  %v859 = vmul.f32 %v801, %v856
  %862 = vrot.lane.b32.xlu0 %v858, 120
  %v863 = vpop.permute.xlu0 %862
  %864 = vrot.lane.b32.xlu0 %v859, 120
  %v865 = vpop.permute.xlu0 %864
  %v868 = vadd.f32 %v828, %v863
  %v869 = vadd.f32 %v829, %v865
  %v870 = vlaneseq
  %v871 = vshrl.u32 %v870, 7
  %v872 = vsub.s32 3, %v871
  %v873 = vrot.slane %v297, %v872
  %875 = vrot.lane.b32.xlu0 %v873, 8
  %v876 = vpop.permute.xlu0 %875
  %v878 = vmul.f32 %v810, %v876
  %v879 = vmul.f32 %v811, %v876
  %882 = vrot.lane.b32.xlu0 %v878, 120
  %v883 = vpop.permute.xlu0 %882
  %884 = vrot.lane.b32.xlu0 %v879, 120
  %v885 = vpop.permute.xlu0 %884
  %v888 = vadd.f32 %v848, %v883
  %v889 = vadd.f32 %v849, %v885
  %v890 = vlaneseq
  %v891 = vshrl.u32 %v890, 7
  %v892 = vsub.s32 3, %v891
  %v893 = vrot.slane %v302, %v892
  %895 = vrot.lane.b32.xlu0 %v893, 8
  %v896 = vpop.permute.xlu0 %895
  %v898 = vmul.f32 %v820, %v896
  %v899 = vmul.f32 %v821, %v896
  %902 = vrot.lane.b32.xlu0 %v898, 120
  %v903 = vpop.permute.xlu0 %902
  %904 = vrot.lane.b32.xlu0 %v899, 120
  %v905 = vpop.permute.xlu0 %904
  %v908 = vadd.f32 %v868, %v903
  %v909 = vadd.f32 %v869, %v905
  %v910 = vlaneseq
  %v911 = vshrl.u32 %v910, 7
  %v912 = vsub.s32 4, %v911
  %v913 = vrot.slane %v297, %v912
  %915 = vrot.lane.b32.xlu0 %v913, 16
  %v916 = vpop.permute.xlu0 %915
  %v918 = vmul.f32 %v790, %v916
  %v919 = vmul.f32 %v791, %v916
  %922 = vrot.lane.b32.xlu0 %v918, 112
  %v923 = vpop.permute.xlu0 %922
  %924 = vrot.lane.b32.xlu0 %v919, 112
  %v925 = vpop.permute.xlu0 %924
  %v928 = vadd.f32 %v888, %v923
  %v929 = vadd.f32 %v889, %v925
  %v930 = vlaneseq
  %v931 = vshrl.u32 %v930, 7
  %v932 = vsub.s32 4, %v931
  %v933 = vrot.slane %v302, %v932
  %935 = vrot.lane.b32.xlu0 %v933, 16
  %v936 = vpop.permute.xlu0 %935
  %v938 = vmul.f32 %v800, %v936
  %v939 = vmul.f32 %v801, %v936
  %942 = vrot.lane.b32.xlu0 %v938, 112
  %v943 = vpop.permute.xlu0 %942
  %944 = vrot.lane.b32.xlu0 %v939, 112
  %v945 = vpop.permute.xlu0 %944
  %v948 = vadd.f32 %v908, %v943
  %v949 = vadd.f32 %v909, %v945
  %v950 = vld [vmem:[%s0 + $0x2] sm:$0xff]
  %v951 = vld [vmem:[%s0 + $0x42] sm:$0xff]
  %v952 = vlaneseq
  %v953 = vshrl.u32 %v952, 7
  %v954 = vsub.s32 0, %v953
  %v955 = vrot.slane %v298, %v954
  %v956 = vmul.f32 %v950, %v955
  %v957 = vmul.f32 %v951, %v955
  %v958 = vadd.f32 %v928, %v956
  %v959 = vadd.f32 %v929, %v957
  %v960 = vld [vmem:[#allocation2 + $0x2] sm:$0xff]
  %v961 = vld [vmem:[#allocation2 + $0x42] sm:$0xff]
  %v962 = vlaneseq
  %v963 = vshrl.u32 %v962, 7
  %v964 = vsub.s32 0, %v963
  %v965 = vrot.slane %v303, %v964
  %v966 = vmul.f32 %v960, %v965
  %v967 = vmul.f32 %v961, %v965
  %v968 = vadd.f32 %v948, %v966
  %v969 = vadd.f32 %v949, %v967
  %v970 = vld [vmem:[%s324 + $0x2] sm:$0xff]
  %v971 = vld [vmem:[%s324 + $0x42] sm:$0xff]
  %v972 = vlaneseq
  %v973 = vshrl.u32 %v972, 7
  %v974 = vsub.s32 1, %v973
  %v975 = vrot.slane %v298, %v974
  %v976 = vmul.f32 %v970, %v975
  %v977 = vmul.f32 %v971, %v975
  %v978 = vadd.f32 %v958, %v976
  %v979 = vadd.f32 %v959, %v977
  %v980 = vld [vmem:[%s335 + $0x2] sm:$0xff]
  %v981 = vld [vmem:[%s335 + $0x42] sm:$0xff]
  %v982 = vlaneseq
  %v983 = vshrl.u32 %v982, 7
  %v984 = vsub.s32 1, %v983
  %v985 = vrot.slane %v303, %v984
  %v986 = vmul.f32 %v980, %v985
  %v987 = vmul.f32 %v981, %v985
  %v988 = vadd.f32 %v968, %v986
  %v989 = vadd.f32 %v969, %v987
  %v990 = vlaneseq
  %v991 = vshrl.u32 %v990, 7
  %v992 = vsub.s32 2, %v991
  %v993 = vrot.slane %v298, %v992
  %995 = vrot.lane.b32.xlu0 %v993, 8
  %v996 = vpop.permute.xlu0 %995
  %v998 = vmul.f32 %v950, %v996
  %v999 = vmul.f32 %v951, %v996
  %1002 = vrot.lane.b32.xlu0 %v998, 120
  %v1003 = vpop.permute.xlu0 %1002
  %1004 = vrot.lane.b32.xlu0 %v999, 120
  %v1005 = vpop.permute.xlu0 %1004
  %v1008 = vadd.f32 %v978, %v1003
  %v1009 = vadd.f32 %v979, %v1005
  %v1010 = vlaneseq
  %v1011 = vshrl.u32 %v1010, 7
  %v1012 = vsub.s32 2, %v1011
  %v1013 = vrot.slane %v303, %v1012
  %1015 = vrot.lane.b32.xlu0 %v1013, 8
  %v1016 = vpop.permute.xlu0 %1015
  %v1018 = vmul.f32 %v960, %v1016
  %v1019 = vmul.f32 %v961, %v1016
  %1022 = vrot.lane.b32.xlu0 %v1018, 120
  %v1023 = vpop.permute.xlu0 %1022
  %1024 = vrot.lane.b32.xlu0 %v1019, 120
  %v1025 = vpop.permute.xlu0 %1024
  %v1028 = vadd.f32 %v988, %v1023
  %v1029 = vadd.f32 %v989, %v1025
  %v1030 = vlaneseq
  %v1031 = vshrl.u32 %v1030, 7
  %v1032 = vsub.s32 3, %v1031
  %v1033 = vrot.slane %v298, %v1032
  %1035 = vrot.lane.b32.xlu0 %v1033, 8
  %v1036 = vpop.permute.xlu0 %1035
  %v1038 = vmul.f32 %v970, %v1036
  %v1039 = vmul.f32 %v971, %v1036
  %1042 = vrot.lane.b32.xlu0 %v1038, 120
  %v1043 = vpop.permute.xlu0 %1042
  %1044 = vrot.lane.b32.xlu0 %v1039, 120
  %v1045 = vpop.permute.xlu0 %1044
  %v1048 = vadd.f32 %v1008, %v1043
  %v1049 = vadd.f32 %v1009, %v1045
  %v1050 = vlaneseq
  %v1051 = vshrl.u32 %v1050, 7
  %v1052 = vsub.s32 3, %v1051
  %v1053 = vrot.slane %v303, %v1052
  %1055 = vrot.lane.b32.xlu0 %v1053, 8
  %v1056 = vpop.permute.xlu0 %1055
  %v1058 = vmul.f32 %v980, %v1056
  %v1059 = vmul.f32 %v981, %v1056
  %1062 = vrot.lane.b32.xlu0 %v1058, 120
  %v1063 = vpop.permute.xlu0 %1062
  %1064 = vrot.lane.b32.xlu0 %v1059, 120
  %v1065 = vpop.permute.xlu0 %1064
  %v1068 = vadd.f32 %v1028, %v1063
  %v1069 = vadd.f32 %v1029, %v1065
  %v1070 = vlaneseq
  %v1071 = vshrl.u32 %v1070, 7
  %v1072 = vsub.s32 4, %v1071
  %v1073 = vrot.slane %v298, %v1072
  %1075 = vrot.lane.b32.xlu0 %v1073, 16
  %v1076 = vpop.permute.xlu0 %1075
  %v1078 = vmul.f32 %v950, %v1076
  %v1079 = vmul.f32 %v951, %v1076
  %1082 = vrot.lane.b32.xlu0 %v1078, 112
  %v1083 = vpop.permute.xlu0 %1082
  %1084 = vrot.lane.b32.xlu0 %v1079, 112
  %v1085 = vpop.permute.xlu0 %1084
  %v1088 = vadd.f32 %v1048, %v1083
  %v1089 = vadd.f32 %v1049, %v1085
  %v1090 = vlaneseq
  %v1091 = vshrl.u32 %v1090, 7
  %v1092 = vsub.s32 4, %v1091
  %v1093 = vrot.slane %v303, %v1092
  %1095 = vrot.lane.b32.xlu0 %v1093, 16
  %v1096 = vpop.permute.xlu0 %1095
  %v1098 = vmul.f32 %v960, %v1096
  %v1099 = vmul.f32 %v961, %v1096
  %1102 = vrot.lane.b32.xlu0 %v1098, 112
  %v1103 = vpop.permute.xlu0 %1102
  %1104 = vrot.lane.b32.xlu0 %v1099, 112
  %v1105 = vpop.permute.xlu0 %1104
  %v1108 = vadd.f32 %v1068, %v1103
  %v1109 = vadd.f32 %v1069, %v1105
  %v1110 = vld [vmem:[%s2] sm:$0x1]
  %v1112 = vlaneseq
  %v1113 = vshrl.u32 %v1112, 7
  %v1114 = vsub.s32 0, %v1113
  %v1115 = vrot.slane %v1110, %v1114
  %v1117 = vadd.f32 %v1088, %v1115
  %v1118 = vadd.f32 %v1089, %v1115
  %v1119 = vpack.c.bf16 %v1118, %v1117
  %v1120 = vld [vmem:[%s6] sm:$0x1]
  %v1122 = vlaneseq
  %v1123 = vshrl.u32 %v1122, 7
  %v1124 = vsub.s32 0, %v1123
  %v1125 = vrot.slane %v1120, %v1124
  %v1127 = vadd.f32 %v1108, %v1125
  %v1128 = vadd.f32 %v1109, %v1125
  %v1129 = vpack.c.bf16 %v1128, %v1127
  %v1130 = vld [vmem:[%s7] sm:$0xf]
  %v1131 = vld [vmem:[%s7 + $0x4] sm:$0xf]
  %v1132 = vld [vmem:[%s7 + $0x8] sm:$0xf]
  %v1133 = vld [vmem:[%s7 + $0xc] sm:$0xf]
  %v1134 = vld [vmem:[%s7 + $0x10] sm:$0xf]
  %v1135 = vld [vmem:[%s7 + $0x14] sm:$0xf]
  %v1136 = vld [vmem:[%s7 + $0x18] sm:$0xf]
  %v1137 = vld [vmem:[%s7 + $0x1c] sm:$0xf]
  %v1138 = vld [vmem:[%s8] sm:$0xf]
  %v1139 = vld [vmem:[%s8 + $0x4] sm:$0xf]
  %v1140 = vld [vmem:[%s8 + $0x8] sm:$0xf]
  %v1141 = vld [vmem:[%s8 + $0xc] sm:$0xf]
  %v1142 = vld [vmem:[%s8 + $0x10] sm:$0xf]
  %v1143 = vld [vmem:[%s8 + $0x14] sm:$0xf]
  %v1144 = vld [vmem:[%s8 + $0x18] sm:$0xf]
  %v1145 = vld [vmem:[%s8 + $0x1c] sm:$0xf]
  %v1154 = vunpack.c.l.b16 %v1138
  %v1155 = vunpack.c.l.b16 %v1139
  %v1156 = vunpack.c.l.b16 %v1140
  %v1157 = vunpack.c.l.b16 %v1141
  %v1158 = vunpack.c.l.b16 %v1142
  %v1159 = vunpack.c.l.b16 %v1143
  %v1160 = vunpack.c.l.b16 %v1144
  %v1161 = vunpack.c.l.b16 %v1145
  %v1162 = vpack.c.b16 %v1155, %v1154
  %v1163 = vpack.c.b16 %v1157, %v1156
  %v1164 = vpack.c.b16 %v1159, %v1158
  %v1165 = vpack.c.b16 %v1161, %v1160
  %vm1170 = vcmask 523264
  %v1172 = vsel %vm1170, %v1129, 0
  %1174 = vmatprep.subr.bf16.mxu0 0
  %1175 = vmatpush1.bf16.msra.mxu0 0
  %1176 = vmatprep.subr.bf16.mxu0 0
  %1177 = vmatpush1.bf16.msra.mxu0 0
  %1178 = vmatprep.subr.bf16.mxu0 0
  %1179 = vmatpush1.bf16.msra.mxu0 0
  %1180 = vmatprep.subr.bf16.mxu0 0
  %1181 = vmatpush1.bf16.msra.mxu0 0
  %1182 = vmatprep.subr.bf16.mxu0 0
  %1183 = vmatpush1.bf16.msra.mxu0 %v1165
  %1184 = vmatprep.subr.bf16.mxu0 0
  %1185 = vmatpush1.bf16.msra.mxu0 %v1164
  %1186 = vmatprep.subr.bf16.mxu0 0
  %1187 = vmatpush1.bf16.msra.mxu0 %v1163
  %1188 = vmatprep.subr.bf16.mxu0 0
  %1189 = vmatpush1.bf16.msra.mxu0 %v1162
  %1190 = vmatprep.subr.bf16.mxu0 0
  %1191 = vmatpush2.bf16.msra.mxu0 0
  %1192 = vmatprep.subr.bf16.mxu0 0
  %1193 = vmatpush2.bf16.msra.mxu0 0
  %1194 = vmatprep.subr.bf16.mxu0 0
  %1195 = vmatpush2.bf16.msra.mxu0 0
  %1196 = vmatprep.subr.bf16.mxu0 0
  %1197 = vmatpush2.bf16.msra.mxu0 0
  %1198 = vmatprep.subr.bf16.mxu0 0
  %1199 = vmatpush2.bf16.msra.mxu0 0
  %1200 = vmatprep.subr.bf16.mxu0 0
  %1201 = vmatpush2.bf16.msra.mxu0 0
  %1202 = vmatprep.subr.bf16.mxu0 0
  %1203 = vmatpush2.bf16.msra.mxu0 0
  %1204 = vmatprep.subr.bf16.mxu0 0
  %1205 = vmatpush2.bf16.msra.mxu0 0
  %1206 = vmatprep.mubr.bf16.mxu0 0
  %1207 = vmatmul.mubr.bf16.gmra.mxu0 %v1172
  %v1208 = vpop.f32.mrf.mxu0
  %v1209 = vadd.f32 0.0, %v1208
  %v1210 = vpop.f32.mrf.mxu0
  %v1211 = vpop.f32.mrf.mxu0
  %v1212 = vadd.f32 0.0, %v1211
  %v1213 = vpop.f32.mrf.mxu0
  %1214 = vdwg.mxu0
  %v1223 = vunpack.c.l.b16 %v1130
  %v1224 = vunpack.c.l.b16 %v1131
  %v1225 = vunpack.c.l.b16 %v1132
  %v1226 = vunpack.c.l.b16 %v1133
  %v1227 = vunpack.c.l.b16 %v1134
  %v1228 = vunpack.c.l.b16 %v1135
  %v1229 = vunpack.c.l.b16 %v1136
  %v1230 = vunpack.c.l.b16 %v1137
  %v1231 = vpack.c.b16 %v1224, %v1223
  %v1232 = vpack.c.b16 %v1226, %v1225
  %v1233 = vpack.c.b16 %v1228, %v1227
  %v1234 = vpack.c.b16 %v1230, %v1229
  %v1240 = vsel %vm1170, %v1119, 0
  %1242 = vmatprep.subr.bf16.mxu0 0
  %1243 = vmatpush1.bf16.msra.mxu0 0
  %1244 = vmatprep.subr.bf16.mxu0 0
  %1245 = vmatpush1.bf16.msra.mxu0 0
  %1246 = vmatprep.subr.bf16.mxu0 0
  %1247 = vmatpush1.bf16.msra.mxu0 0
  %1248 = vmatprep.subr.bf16.mxu0 0
  %1249 = vmatpush1.bf16.msra.mxu0 0
  %1250 = vmatprep.subr.bf16.mxu0 0
  %1251 = vmatpush1.bf16.msra.mxu0 %v1234
  %1252 = vmatprep.subr.bf16.mxu0 0
  %1253 = vmatpush1.bf16.msra.mxu0 %v1233
  %1254 = vmatprep.subr.bf16.mxu0 0
  %1255 = vmatpush1.bf16.msra.mxu0 %v1232
  %1256 = vmatprep.subr.bf16.mxu0 0
  %1257 = vmatpush1.bf16.msra.mxu0 %v1231
  %1258 = vmatprep.subr.bf16.mxu0 0
  %1259 = vmatpush2.bf16.msra.mxu0 0
  %1260 = vmatprep.subr.bf16.mxu0 0
  %1261 = vmatpush2.bf16.msra.mxu0 0
  %1262 = vmatprep.subr.bf16.mxu0 0
  %1263 = vmatpush2.bf16.msra.mxu0 0
  %1264 = vmatprep.subr.bf16.mxu0 0
  %1265 = vmatpush2.bf16.msra.mxu0 0
  %1266 = vmatprep.subr.bf16.mxu0 0
  %1267 = vmatpush2.bf16.msra.mxu0 0
  %1268 = vmatprep.subr.bf16.mxu0 0
  %1269 = vmatpush2.bf16.msra.mxu0 0
  %1270 = vmatprep.subr.bf16.mxu0 0
  %1271 = vmatpush2.bf16.msra.mxu0 0
  %1272 = vmatprep.subr.bf16.mxu0 0
  %1273 = vmatpush2.bf16.msra.mxu0 0
  %1274 = vmatprep.mubr.bf16.mxu0 0
  %1275 = vmatmul.mubr.bf16.gmra.mxu0 %v1240
  %v1276 = vpop.f32.mrf.mxu0
  %v1277 = vadd.f32 %v1209, %v1276
  %v1278 = vpop.f32.mrf.mxu0
  %v1279 = vpop.f32.mrf.mxu0
  %v1280 = vadd.f32 %v1212, %v1279
  %v1281 = vpop.f32.mrf.mxu0
  %1282 = vdwg.mxu0
  %v1283 = vld [vmem:[%s9] sm:$0x1]
  %v1285 = vlaneseq
  %v1286 = vshrl.u32 %v1285, 7
  %v1287 = vsub.s32 0, %v1286
  %v1288 = vrot.slane %v1283, %v1287
  %v1290 = vadd.f32 %v1277, %v1288
  %v1291 = vadd.f32 %v1280, %v1288
  %v1292 = vmax.f32 %v1290, 0.0
  %v1293 = vmax.f32 %v1291, 0.0
  %1294 = vst [vmem:[%s10] sm:$0xff] %v1292
  %1295 = vst [vmem:[%s10 + $0x8] sm:$0xff] %v1293
  // Predicated region
  $region42: #{down_block.1} parent=0 // pred_check
    _
  $region43: #{down_block.1} parent=0 // pred_check_branch
    %1297 = sbr.rel (0) target = $region45
  $region44: #{down_block.1} parent=0 // pred_region
    _
  $region45: #{down_block.1} parent=0 // pred_fallthru
    _
  // Predicated region
  $region46: #{down_block.1} parent=0 // pred_check
    _
  $region47: #{down_block.1} parent=0 // pred_check_branch
    %1299 = sbr.rel (0) target = $region49
  $region48: #{down_block.1} parent=0 // pred_region
    _
  $region49: #{down_block.1} parent=0 // pred_fallthru
    _

</llo_original>
